<compile_context>
chip_gen: v5e
topology: v5e:2x2
jax: 0.10.0
libtpu: 0.0.40
codegen_flags: <defaults>
</compile_context>

<pallas_src>
import math

import jax
import jax.numpy as jnp
from jax import lax
from jax.experimental import pallas as pl
from jax.experimental.pallas import tpu as pltpu

EPS = 1e-5                      # PyTorch GroupNorm default eps
INV_SQRT2 = 1.0 / math.sqrt(2.0)
GELU_TANH_C = math.sqrt(2.0 / math.pi)


def _gelu(x, approximate=False):
    if approximate:
        # tanh approximation (single EUP op dominant) — optional, slight numeric
        # delta vs PyTorch's exact nn.GELU.
        return 0.5 * x * (1.0 + jnp.tanh(GELU_TANH_C * (x + 0.044715 * x * x * x)))
    return 0.5 * x * (1.0 + lax.erf(x * INV_SQRT2))


def upsample_block(x, skip, w_ct, b_ct, g1, be1, w_sc, b_sc, g2, be2, *,
                   kernel_size=3, upsample_factor=2,
                   compute_dtype=jnp.bfloat16, out_dtype=jnp.float32,
                   batch_block=None, gelu_approximate=False):
    """UpsampleBlock forward.

    x:    (B, Cin, Lin) float
    skip: (B, Cskip, 2*Lin) float (already at the upsampled length)
    w_ct: (Cin, Cout, K) ConvTranspose1d weight; b_ct/g1/be1/b_sc/g2/be2: (Cout, 1)
    w_sc: (Cout, Cout + Cskip) 1x1 conv weight
    Returns (B, Cout, 2*Lin) in out_dtype.
    """
    B, Cin, Lin = x.shape
    K, s = kernel_size, upsample_factor
    if K != 3 or s != 2:
        raise NotImplementedError("polyphase kernel specialized to K=3, stride=2")
    Lout = Lin * s
    Cin_w, Cout, Kw = w_ct.shape
    assert Cin_w == Cin and Kw == K
    Cskip = skip.shape[1]
    assert skip.shape == (B, Cskip, Lout), "skip must already be at the target length"
    Ctot = Cout + Cskip
    assert w_sc.shape == (Cout, Ctot)
    cdt = compute_dtype

    # ---- batch blocking: Bt samples per grid step (per-sample GroupNorm inside) ----
    if batch_block is None:
        batch_block = 2 if (B % 2 == 0 and B >= 4) else 1
    assert B % batch_block == 0, "B must be divisible by batch_block"
    Bt = batch_block

    # ---- wrapper-side layout prep (bounded O(L) copies, no O(L^2) work) -----------
    # One trailing zero column so x[:, m] and x[:, m+1] are static in-bounds slices
    # of the same block (smallest tensor; avoids in-kernel lane-shift constructs).
    x_pad = jnp.pad(x, ((0, 0), (0, 0), (0, 1)))
    # De-interleaved skip (even / odd output positions) — replaces the removed
    # in-kernel interleave; one strided copy of skip.
    skip_even = skip[:, :, 0::2]
    skip_odd = skip[:, :, 1::2]

    # Polyphase conv-transpose taps (K=3, s=2, p=1, op=1):
    #   y[:, 2m]   = W1^T x[:, m]
    #   y[:, 2m+1] = W2^T x[:, m] + W0^T x[:, m+1]   (x[:, Lin] := 0)
    w1t = w_ct[:, :, 1].T
    w2t = w_ct[:, :, 2].T
    w0t = w_ct[:, :, 0].T
    wct_packed = jnp.concatenate([w1t, w2t, w0t], axis=0).astype(cdt)   # (3*Cout, Cin)
    w_sc_c = w_sc.astype(cdt)                                           # (Cout, Ctot)

    # Packed per-channel params (one tiny f32 operand instead of six).
    def col(v):
        return jnp.reshape(v, (-1, 1)).astype(jnp.float32)
    params = jnp.concatenate(
        [col(b_ct), col(g1), col(be1), col(b_sc), col(g2), col(be2),
         jnp.zeros((Cout, 2), jnp.float32)], axis=1)                    # (Cout, 8)

    inv_n = 1.0 / float(Cout * Lout)   # GroupNorm(1, Cout) element count per sample

    def kernel(x_ref, se_ref, so_ref, wct_ref, wsc_ref, p_ref, oe_ref, oo_ref):
        # x_ref:   (Bt, Cin, Lin+1)   input + trailing zero column
        # se_ref:  (Bt, Cskip, Lin)   skip at even output positions
        # so_ref:  (Bt, Cskip, Lin)   skip at odd output positions
        # wct_ref: (3*Cout, Cin)      [W1^T ; W2^T ; W0^T]
        # wsc_ref: (Cout, Cout+Cskip) 1x1 conv weight
        # p_ref:   (Cout, 8) f32      packed per-channel params
        # oe_ref / oo_ref: (Bt, Cout, Lin)  even / odd phase outputs (lane-dense)
        w1 = wct_ref[0:Cout, :]
        w2 = wct_ref[Cout:2 * Cout, :]
        w0 = wct_ref[2 * Cout:3 * Cout, :]
        wy = wsc_ref[:, 0:Cout]
        ws = wsc_ref[:, Cout:]
        bias_ct = p_ref[:, 0:1]
        gn1_g, gn1_b = p_ref[:, 1:2], p_ref[:, 2:3]
        bias_sc = p_ref[:, 3:4]
        gn2_g, gn2_b = p_ref[:, 4:5], p_ref[:, 5:6]

        for b in range(Bt):                           # static unroll over batch block
            xfull = x_ref[b].astype(cdt)              # (Cin, Lin+1), cast in-kernel
            xb = xfull[:, 0:Lin]                      # x[:, m]
            xn = xfull[:, 1:Lin + 1]                  # x[:, m+1] (0 at the end)

            # ConvTranspose1d — per-phase dots (f32 accumulation).
            ye = jnp.dot(w1, xb, preferred_element_type=jnp.float32) + bias_ct
            yo = (jnp.dot(w2, xb, preferred_element_type=jnp.float32)
                  + jnp.dot(w0, xn, preferred_element_type=jnp.float32) + bias_ct)

            # GroupNorm(1, Cout): per-sample stats over both phases (= full Lout),
            # mean-shifted two-pass variance, clamped >= 0.
            mean1 = (jnp.sum(ye) + jnp.sum(yo)) * inv_n
            var1 = (jnp.sum((ye - mean1) ** 2) + jnp.sum((yo - mean1) ** 2)) * inv_n
            inv1 = lax.rsqrt(jnp.maximum(var1, 0.0) + EPS)
            ye = _gelu((ye - mean1) * inv1 * gn1_g + gn1_b, gelu_approximate)
            yo = _gelu((yo - mean1) * inv1 * gn1_g + gn1_b, gelu_approximate)

            # 1x1 conv over channel-concat [y ; skip], as two dots per phase
            # (no VMEM concat staging).  NOTE: y is quantized to compute_dtype here
            # when compute_dtype=bf16 (extra rounding vs the f32 reference).
            se = se_ref[b].astype(cdt)
            so = so_ref[b].astype(cdt)
            ze = (jnp.dot(wy, ye.astype(cdt), preferred_element_type=jnp.float32)
                  + jnp.dot(ws, se, preferred_element_type=jnp.float32) + bias_sc)
            zo = (jnp.dot(wy, yo.astype(cdt), preferred_element_type=jnp.float32)
                  + jnp.dot(ws, so, preferred_element_type=jnp.float32) + bias_sc)

            # Conv1dBlock tail: GroupNorm(1, Cout) + GELU (dropout=0 -> identity).
            mean2 = (jnp.sum(ze) + jnp.sum(zo)) * inv_n
            var2 = (jnp.sum((ze - mean2) ** 2) + jnp.sum((zo - mean2) ** 2)) * inv_n
            inv2 = lax.rsqrt(jnp.maximum(var2, 0.0) + EPS)
            oe_ref[b] = _gelu((ze - mean2) * inv2 * gn2_g + gn2_b,
                              gelu_approximate).astype(oe_ref.dtype)
            oo_ref[b] = _gelu((zo - mean2) * inv2 * gn2_g + gn2_b,
                              gelu_approximate).astype(oo_ref.dtype)

    oe, oo = pl.pallas_call(
        kernel,
        out_shape=(jax.ShapeDtypeStruct((B, Cout, Lin), out_dtype),
                   jax.ShapeDtypeStruct((B, Cout, Lin), out_dtype)),
        grid_spec=pl.GridSpec(
            grid=(B // Bt,),
            in_specs=[
                pl.BlockSpec((Bt, Cin, Lin + 1), lambda i: (i, 0, 0)),
                pl.BlockSpec((Bt, Cskip, Lin), lambda i: (i, 0, 0)),
                pl.BlockSpec((Bt, Cskip, Lin), lambda i: (i, 0, 0)),
                pl.BlockSpec((3 * Cout, Cin), lambda i: (0, 0)),
                pl.BlockSpec((Cout, Ctot), lambda i: (0, 0)),
                pl.BlockSpec((Cout, 8), lambda i: (0, 0)),
            ],
            out_specs=(pl.BlockSpec((Bt, Cout, Lin), lambda i: (i, 0, 0)),
                       pl.BlockSpec((Bt, Cout, Lin), lambda i: (i, 0, 0))),
        ),
        compiler_params=pltpu.CompilerParams(dimension_semantics=("parallel",)),
    )(x_pad, skip_even, skip_odd, wct_packed, w_sc_c, params)

    # Final even/odd interleave: one O(L) stack+reshape (review option (a)),
    # replacing the removed O(L^2) in-kernel selection matmuls.
    return jnp.stack([oe, oo], axis=-1).reshape(B, Cout, Lout)


def reference(x, skip, w_ct, b_ct, g1, be1, w_sc, b_sc, g2, be2,
              *, kernel_size=3, upsample_factor=2):
    """Pure-JAX f32 reference with the module's math (for validation)."""
    B, Cin, Lin = x.shape
    K, s = kernel_size, upsample_factor
    p, op = (K - 1) // 2, s - 1
    Lout = (Lin - 1) * s - 2 * p + K + op
    xz = jnp.zeros((B, Cin, (Lin - 1) * s + 1), x.dtype).at[:, :, ::s].set(x)
    x_pad = jnp.pad(xz, ((0, 0), (0, 0), (K - 1 - p, K - 1 - p + op)))
    wconv = jnp.flip(w_ct, axis=2).transpose(2, 1, 0)      # (K, Cout, Cin)

    def gn(y, g, b):
        mean = y.mean(axis=(1, 2), keepdims=True)
        var = ((y - mean) ** 2).mean(axis=(1, 2), keepdims=True)
        return (y - mean) / jnp.sqrt(var + EPS) * g[None] + b[None]

    def gelu(y):
        return 0.5 * y * (1.0 + jax.scipy.special.erf(y * INV_SQRT2))

    y = sum(jnp.einsum('oc,bcl->bol', wconv[k], x_pad[:, :, k:k + Lout])
            for k in range(K)) + b_ct[None]
    y = gelu(gn(y, g1, be1))
    cat = jnp.concatenate([y, skip], axis=1)
    z = jnp.einsum('oc,bcl->bol', w_sc, cat) + b_sc[None]
    z = gelu(gn(z, g2, be2))
    return z


if __name__ == "__main__":
    # Small but lane-dense demo shapes (Lout = 256 is a multiple of 128).
    # B=4 exercises the batch-blocked grid (Bt=2 -> grid extent 2, even for v7x).
    B, Cin, Cskip, Cout, Lin = 4, 4, 4, 8, 128
    K, s = 3, 2
    Lout = Lin * s
    Ctot = Cout + Cskip

    key = jax.random.PRNGKey(0)
    keys = jax.random.split(key, 10)

    x = jax.random.normal(keys[0], (B, Cin, Lin), jnp.float32)
    skip = jax.random.normal(keys[1], (B, Cskip, Lout), jnp.float32)

    w_ct = jax.random.normal(keys[2], (Cin, Cout, K), jnp.float32) * math.sqrt(2.0 / (Cout * K))
    b_ct = 0.1 * jax.random.normal(keys[3], (Cout, 1), jnp.float32)
    g1 = 1.0 + 0.1 * jax.random.normal(keys[4], (Cout, 1), jnp.float32)
    be1 = 0.1 * jax.random.normal(keys[5], (Cout, 1), jnp.float32)

    w_sc = jax.random.normal(keys[6], (Cout, Ctot), jnp.float32) * math.sqrt(2.0 / Cout)
    b_sc = 0.1 * jax.random.normal(keys[7], (Cout, 1), jnp.float32)
    g2 = 1.0 + 0.1 * jax.random.normal(keys[8], (Cout, 1), jnp.float32)
    be2 = 0.1 * jax.random.normal(keys[9], (Cout, 1), jnp.float32)

    ref = reference(x, skip, w_ct, b_ct, g1, be1, w_sc, b_sc, g2, be2,
                    kernel_size=K, upsample_factor=s)

    # f32 compute path (structure check). Tolerance covers possible reduced-precision
    # f32 matmul modes on the MXU; see review note on validation tightness.
    run_f32 = jax.jit(lambda *a: upsample_block(*a, kernel_size=K, upsample_factor=s,
                                                compute_dtype=jnp.float32))
    out_f32 = jax.block_until_ready(run_f32(x, skip, w_ct, b_ct, g1, be1,
                                            w_sc, b_sc, g2, be2))
    assert out_f32.shape == (B, Cout, Lout)
    assert jnp.allclose(out_f32, ref, atol=2e-2, rtol=2e-2), \
        "f32-path kernel vs reference mismatch"

    # Optimized path: bf16 MXU I/O (f32 accumulation + f32 norm/GELU math).
    run_bf16 = jax.jit(lambda *a: upsample_block(*a, kernel_size=K, upsample_factor=s,
                                                 compute_dtype=jnp.bfloat16))
    out_bf16 = jax.block_until_ready(run_bf16(x, skip, w_ct, b_ct, g1, be1,
                                              w_sc, b_sc, g2, be2))
    assert out_bf16.shape == (B, Cout, Lout)
    assert jnp.allclose(out_bf16, ref, atol=5e-2, rtol=5e-2), \
        "bf16-path kernel vs reference mismatch"

    print("KERNEL_OK")
</pallas_src>

<mosaic_0001>
module attributes {stable_mosaic.version = 11 : i64} {
  func.func @kernel(%arg0: i32, %arg1: memref<2x4x129xf32, #tpu.memory_space<vmem>>, %arg2: memref<2x4x128xf32, #tpu.memory_space<vmem>>, %arg3: memref<2x4x128xf32, #tpu.memory_space<vmem>>, %arg4: memref<24x4xf32, #tpu.memory_space<vmem>>, %arg5: memref<8x12xf32, #tpu.memory_space<vmem>>, %arg6: memref<8x8xf32, #tpu.memory_space<vmem>>, %arg7: memref<2x8x128xf32, #tpu.memory_space<vmem>>, %arg8: memref<2x8x128xf32, #tpu.memory_space<vmem>>) attributes {dimension_semantics = [#tpu.dimension_semantics<parallel>], iteration_bounds = array<i64: 2>, scalar_prefetch = 0 : i64, scratch_operands = 0 : i64, tpu.core_type = #tpu.core_type<tc>, window_params = [{transform_indices = @transform_0, window_bounds = array<i64: 2, 4, 129>}, {transform_indices = @transform_1, window_bounds = array<i64: 2, 4, 128>}, {transform_indices = @transform_2, window_bounds = array<i64: 2, 4, 128>}, {pipeline_mode = #tpu.pipeline_mode<synchronous>, transform_indices = @transform_3, window_bounds = array<i64: 24, 4>}, {pipeline_mode = #tpu.pipeline_mode<synchronous>, transform_indices = @transform_4, window_bounds = array<i64: 8, 12>}, {pipeline_mode = #tpu.pipeline_mode<synchronous>, transform_indices = @transform_5, window_bounds = array<i64: 8, 8>}, {transform_indices = @transform_6, window_bounds = array<i64: 2, 8, 128>}, {transform_indices = @transform_7, window_bounds = array<i64: 2, 8, 128>}]} {
    %c0 = arith.constant 0 : index
    %c0_0 = arith.constant 0 : index
    %0 = vector.load %arg4[%c0, %c0_0] : memref<24x4xf32, #tpu.memory_space<vmem>>, vector<8x4xf32>
    %c8 = arith.constant 8 : index
    %c0_1 = arith.constant 0 : index
    %1 = vector.load %arg4[%c8, %c0_1] : memref<24x4xf32, #tpu.memory_space<vmem>>, vector<8x4xf32>
    %c16 = arith.constant 16 : index
    %c0_2 = arith.constant 0 : index
    %2 = vector.load %arg4[%c16, %c0_2] : memref<24x4xf32, #tpu.memory_space<vmem>>, vector<8x4xf32>
    %c0_3 = arith.constant 0 : index
    %c0_4 = arith.constant 0 : index
    %3 = vector.load %arg5[%c0_3, %c0_4] : memref<8x12xf32, #tpu.memory_space<vmem>>, vector<8x8xf32>
    %c0_5 = arith.constant 0 : index
    %c8_6 = arith.constant 8 : index
    %4 = vector.load %arg5[%c0_5, %c8_6] : memref<8x12xf32, #tpu.memory_space<vmem>>, vector<8x4xf32>
    %c0_7 = arith.constant 0 : index
    %c0_8 = arith.constant 0 : index
    %5 = vector.load %arg6[%c0_7, %c0_8] : memref<8x8xf32, #tpu.memory_space<vmem>>, vector<8x1xf32>
    %c0_9 = arith.constant 0 : index
    %c1 = arith.constant 1 : index
    %6 = vector.load %arg6[%c0_9, %c1] : memref<8x8xf32, #tpu.memory_space<vmem>>, vector<8x1xf32>
    %c0_10 = arith.constant 0 : index
    %c2 = arith.constant 2 : index
    %7 = vector.load %arg6[%c0_10, %c2] : memref<8x8xf32, #tpu.memory_space<vmem>>, vector<8x1xf32>
    %c0_11 = arith.constant 0 : index
    %c3 = arith.constant 3 : index
    %8 = vector.load %arg6[%c0_11, %c3] : memref<8x8xf32, #tpu.memory_space<vmem>>, vector<8x1xf32>
    %c0_12 = arith.constant 0 : index
    %c4 = arith.constant 4 : index
    %9 = vector.load %arg6[%c0_12, %c4] : memref<8x8xf32, #tpu.memory_space<vmem>>, vector<8x1xf32>
    %c0_13 = arith.constant 0 : index
    %c5 = arith.constant 5 : index
    %10 = vector.load %arg6[%c0_13, %c5] : memref<8x8xf32, #tpu.memory_space<vmem>>, vector<8x1xf32>
    %c0_14 = arith.constant 0 : index
    %c0_15 = arith.constant 0 : index
    %c0_16 = arith.constant 0 : index
    %11 = vector.load %arg1[%c0_14, %c0_15, %c0_16] : memref<2x4x129xf32, #tpu.memory_space<vmem>>, vector<1x4x129xf32>
    %12 = vector.shape_cast %11 : vector<1x4x129xf32> to vector<4x129xf32>
    %13 = vector.extract_strided_slice %12 {offsets = [0, 0], sizes = [4, 128], strides = [1, 1]} : vector<4x129xf32> to vector<4x128xf32>
    %14 = vector.extract_strided_slice %12 {offsets = [0, 1], sizes = [4, 128], strides = [1, 1]} : vector<4x129xf32> to vector<4x128xf32>
    %cst = arith.constant dense<0.000000e+00> : vector<8x128xf32>
    %15 = tpu.matmul %0, %13, %cst {dimension_numbers = #tpu.dot_dimension_numbers<[1], [0], [0], [1], [0, 0, 1, 1], [], []>} : vector<8x4xf32>, vector<4x128xf32>, vector<8x128xf32> -> vector<8x128xf32>
    %16 = vector.broadcast %5 : vector<8x1xf32> to vector<8x128xf32>
    %17 = arith.addf %15, %16 : vector<8x128xf32>
    %cst_17 = arith.constant dense<0.000000e+00> : vector<8x128xf32>
    %18 = tpu.matmul %1, %13, %cst_17 {dimension_numbers = #tpu.dot_dimension_numbers<[1], [0], [0], [1], [0, 0, 1, 1], [], []>} : vector<8x4xf32>, vector<4x128xf32>, vector<8x128xf32> -> vector<8x128xf32>
    %cst_18 = arith.constant dense<0.000000e+00> : vector<8x128xf32>
    %19 = tpu.matmul %2, %14, %cst_18 {dimension_numbers = #tpu.dot_dimension_numbers<[1], [0], [0], [1], [0, 0, 1, 1], [], []>} : vector<8x4xf32>, vector<4x128xf32>, vector<8x128xf32> -> vector<8x128xf32>
    %20 = arith.addf %18, %19 : vector<8x128xf32>
    %21 = vector.broadcast %5 : vector<8x1xf32> to vector<8x128xf32>
    %22 = arith.addf %20, %21 : vector<8x128xf32>
    %23 = vector.shape_cast %17 : vector<8x128xf32> to vector<1x8x128xf32>
    %cst_19 = arith.constant dense<0.000000e+00> : vector<1xf32>
    %24 = vector.multi_reduction <add>, %23, %cst_19 [1, 2] : vector<1x8x128xf32> to vector<1xf32>
    %25 = vector.shape_cast %24 : vector<1xf32> to vector<1x1x1xf32>
    %26 = vector.extract %25[0, 0, 0] : f32 from vector<1x1x1xf32>
    %27 = vector.shape_cast %22 : vector<8x128xf32> to vector<1x8x128xf32>
    %cst_20 = arith.constant dense<0.000000e+00> : vector<1xf32>
    %28 = vector.multi_reduction <add>, %27, %cst_20 [1, 2] : vector<1x8x128xf32> to vector<1xf32>
    %29 = vector.shape_cast %28 : vector<1xf32> to vector<1x1x1xf32>
    %30 = vector.extract %29[0, 0, 0] : f32 from vector<1x1x1xf32>
    %31 = arith.addf %26, %30 : f32
    %cst_21 = arith.constant 4.8828125E-4 : f32
    %32 = arith.mulf %31, %cst_21 : f32
    %33 = vector.broadcast %32 : f32 to vector<8x128xf32>
    %34 = arith.subf %17, %33 : vector<8x128xf32>
    %35 = arith.mulf %34, %34 : vector<8x128xf32>
    %36 = vector.shape_cast %35 : vector<8x128xf32> to vector<1x8x128xf32>
    %cst_22 = arith.constant dense<0.000000e+00> : vector<1xf32>
    %37 = vector.multi_reduction <add>, %36, %cst_22 [1, 2] : vector<1x8x128xf32> to vector<1xf32>
    %38 = vector.shape_cast %37 : vector<1xf32> to vector<1x1x1xf32>
    %39 = vector.extract %38[0, 0, 0] : f32 from vector<1x1x1xf32>
    %40 = vector.broadcast %32 : f32 to vector<8x128xf32>
    %41 = arith.subf %22, %40 : vector<8x128xf32>
    %42 = arith.mulf %41, %41 : vector<8x128xf32>
    %43 = vector.shape_cast %42 : vector<8x128xf32> to vector<1x8x128xf32>
    %cst_23 = arith.constant dense<0.000000e+00> : vector<1xf32>
    %44 = vector.multi_reduction <add>, %43, %cst_23 [1, 2] : vector<1x8x128xf32> to vector<1xf32>
    %45 = vector.shape_cast %44 : vector<1xf32> to vector<1x1x1xf32>
    %46 = vector.extract %45[0, 0, 0] : f32 from vector<1x1x1xf32>
    %47 = arith.addf %39, %46 : f32
    %cst_24 = arith.constant 4.8828125E-4 : f32
    %48 = arith.mulf %47, %cst_24 : f32
    %cst_25 = arith.constant 0.000000e+00 : f32
    %49 = arith.maximumf %48, %cst_25 : f32
    %cst_26 = arith.constant 9.99999974E-6 : f32
    %50 = arith.addf %49, %cst_26 : f32
    %51 = math.rsqrt %50 : f32
    %52 = vector.broadcast %32 : f32 to vector<8x128xf32>
    %53 = arith.subf %17, %52 : vector<8x128xf32>
    %54 = vector.broadcast %51 : f32 to vector<8x128xf32>
    %55 = arith.mulf %53, %54 : vector<8x128xf32>
    %56 = vector.broadcast %6 : vector<8x1xf32> to vector<8x128xf32>
    %57 = arith.mulf %55, %56 : vector<8x128xf32>
    %58 = vector.broadcast %7 : vector<8x1xf32> to vector<8x128xf32>
    %59 = arith.addf %57, %58 : vector<8x128xf32>
    %cst_27 = arith.constant 5.000000e-01 : f32
    %60 = vector.broadcast %cst_27 : f32 to vector<8x128xf32>
    %61 = arith.mulf %60, %59 : vector<8x128xf32>
    %cst_28 = arith.constant 0.707106769 : f32
    %62 = vector.broadcast %cst_28 : f32 to vector<8x128xf32>
    %63 = arith.mulf %59, %62 : vector<8x128xf32>
    %64 = math.erf %63 : vector<8x128xf32>
    %cst_29 = arith.constant 1.000000e+00 : f32
    %65 = vector.broadcast %cst_29 : f32 to vector<8x128xf32>
    %66 = arith.addf %65, %64 : vector<8x128xf32>
    %67 = arith.mulf %61, %66 : vector<8x128xf32>
    %68 = vector.broadcast %32 : f32 to vector<8x128xf32>
    %69 = arith.subf %22, %68 : vector<8x128xf32>
    %70 = vector.broadcast %51 : f32 to vector<8x128xf32>
    %71 = arith.mulf %69, %70 : vector<8x128xf32>
    %72 = vector.broadcast %6 : vector<8x1xf32> to vector<8x128xf32>
    %73 = arith.mulf %71, %72 : vector<8x128xf32>
    %74 = vector.broadcast %7 : vector<8x1xf32> to vector<8x128xf32>
    %75 = arith.addf %73, %74 : vector<8x128xf32>
    %cst_30 = arith.constant 5.000000e-01 : f32
    %76 = vector.broadcast %cst_30 : f32 to vector<8x128xf32>
    %77 = arith.mulf %76, %75 : vector<8x128xf32>
    %cst_31 = arith.constant 0.707106769 : f32
    %78 = vector.broadcast %cst_31 : f32 to vector<8x128xf32>
    %79 = arith.mulf %75, %78 : vector<8x128xf32>
    %80 = math.erf %79 : vector<8x128xf32>
    %cst_32 = arith.constant 1.000000e+00 : f32
    %81 = vector.broadcast %cst_32 : f32 to vector<8x128xf32>
    %82 = arith.addf %81, %80 : vector<8x128xf32>
    %83 = arith.mulf %77, %82 : vector<8x128xf32>
    %c0_33 = arith.constant 0 : index
    %c0_34 = arith.constant 0 : index
    %c0_35 = arith.constant 0 : index
    %84 = vector.load %arg2[%c0_33, %c0_34, %c0_35] : memref<2x4x128xf32, #tpu.memory_space<vmem>>, vector<1x4x128xf32>
    %85 = vector.shape_cast %84 : vector<1x4x128xf32> to vector<4x128xf32>
    %c0_36 = arith.constant 0 : index
    %c0_37 = arith.constant 0 : index
    %c0_38 = arith.constant 0 : index
    %86 = vector.load %arg3[%c0_36, %c0_37, %c0_38] : memref<2x4x128xf32, #tpu.memory_space<vmem>>, vector<1x4x128xf32>
    %87 = vector.shape_cast %86 : vector<1x4x128xf32> to vector<4x128xf32>
    %cst_39 = arith.constant dense<0.000000e+00> : vector<8x128xf32>
    %88 = tpu.matmul %3, %67, %cst_39 {dimension_numbers = #tpu.dot_dimension_numbers<[1], [0], [0], [1], [0, 0, 1, 1], [], []>} : vector<8x8xf32>, vector<8x128xf32>, vector<8x128xf32> -> vector<8x128xf32>
    %cst_40 = arith.constant dense<0.000000e+00> : vector<8x128xf32>
    %89 = tpu.matmul %4, %85, %cst_40 {dimension_numbers = #tpu.dot_dimension_numbers<[1], [0], [0], [1], [0, 0, 1, 1], [], []>} : vector<8x4xf32>, vector<4x128xf32>, vector<8x128xf32> -> vector<8x128xf32>
    %90 = arith.addf %88, %89 : vector<8x128xf32>
    %91 = vector.broadcast %8 : vector<8x1xf32> to vector<8x128xf32>
    %92 = arith.addf %90, %91 : vector<8x128xf32>
    %cst_41 = arith.constant dense<0.000000e+00> : vector<8x128xf32>
    %93 = tpu.matmul %3, %83, %cst_41 {dimension_numbers = #tpu.dot_dimension_numbers<[1], [0], [0], [1], [0, 0, 1, 1], [], []>} : vector<8x8xf32>, vector<8x128xf32>, vector<8x128xf32> -> vector<8x128xf32>
    %cst_42 = arith.constant dense<0.000000e+00> : vector<8x128xf32>
    %94 = tpu.matmul %4, %87, %cst_42 {dimension_numbers = #tpu.dot_dimension_numbers<[1], [0], [0], [1], [0, 0, 1, 1], [], []>} : vector<8x4xf32>, vector<4x128xf32>, vector<8x128xf32> -> vector<8x128xf32>
    %95 = arith.addf %93, %94 : vector<8x128xf32>
    %96 = vector.broadcast %8 : vector<8x1xf32> to vector<8x128xf32>
    %97 = arith.addf %95, %96 : vector<8x128xf32>
    %98 = vector.shape_cast %92 : vector<8x128xf32> to vector<1x8x128xf32>
    %cst_43 = arith.constant dense<0.000000e+00> : vector<1xf32>
    %99 = vector.multi_reduction <add>, %98, %cst_43 [1, 2] : vector<1x8x128xf32> to vector<1xf32>
    %100 = vector.shape_cast %99 : vector<1xf32> to vector<1x1x1xf32>
    %101 = vector.extract %100[0, 0, 0] : f32 from vector<1x1x1xf32>
    %102 = vector.shape_cast %97 : vector<8x128xf32> to vector<1x8x128xf32>
    %cst_44 = arith.constant dense<0.000000e+00> : vector<1xf32>
    %103 = vector.multi_reduction <add>, %102, %cst_44 [1, 2] : vector<1x8x128xf32> to vector<1xf32>
    %104 = vector.shape_cast %103 : vector<1xf32> to vector<1x1x1xf32>
    %105 = vector.extract %104[0, 0, 0] : f32 from vector<1x1x1xf32>
    %106 = arith.addf %101, %105 : f32
    %cst_45 = arith.constant 4.8828125E-4 : f32
    %107 = arith.mulf %106, %cst_45 : f32
    %108 = vector.broadcast %107 : f32 to vector<8x128xf32>
    %109 = arith.subf %92, %108 : vector<8x128xf32>
    %110 = arith.mulf %109, %109 : vector<8x128xf32>
    %111 = vector.shape_cast %110 : vector<8x128xf32> to vector<1x8x128xf32>
    %cst_46 = arith.constant dense<0.000000e+00> : vector<1xf32>
    %112 = vector.multi_reduction <add>, %111, %cst_46 [1, 2] : vector<1x8x128xf32> to vector<1xf32>
    %113 = vector.shape_cast %112 : vector<1xf32> to vector<1x1x1xf32>
    %114 = vector.extract %113[0, 0, 0] : f32 from vector<1x1x1xf32>
    %115 = vector.broadcast %107 : f32 to vector<8x128xf32>
    %116 = arith.subf %97, %115 : vector<8x128xf32>
    %117 = arith.mulf %116, %116 : vector<8x128xf32>
    %118 = vector.shape_cast %117 : vector<8x128xf32> to vector<1x8x128xf32>
    %cst_47 = arith.constant dense<0.000000e+00> : vector<1xf32>
    %119 = vector.multi_reduction <add>, %118, %cst_47 [1, 2] : vector<1x8x128xf32> to vector<1xf32>
    %120 = vector.shape_cast %119 : vector<1xf32> to vector<1x1x1xf32>
    %121 = vector.extract %120[0, 0, 0] : f32 from vector<1x1x1xf32>
    %122 = arith.addf %114, %121 : f32
    %cst_48 = arith.constant 4.8828125E-4 : f32
    %123 = arith.mulf %122, %cst_48 : f32
    %cst_49 = arith.constant 0.000000e+00 : f32
    %124 = arith.maximumf %123, %cst_49 : f32
    %cst_50 = arith.constant 9.99999974E-6 : f32
    %125 = arith.addf %124, %cst_50 : f32
    %126 = math.rsqrt %125 : f32
    %127 = vector.broadcast %107 : f32 to vector<8x128xf32>
    %128 = arith.subf %92, %127 : vector<8x128xf32>
    %129 = vector.broadcast %126 : f32 to vector<8x128xf32>
    %130 = arith.mulf %128, %129 : vector<8x128xf32>
    %131 = vector.broadcast %9 : vector<8x1xf32> to vector<8x128xf32>
    %132 = arith.mulf %130, %131 : vector<8x128xf32>
    %133 = vector.broadcast %10 : vector<8x1xf32> to vector<8x128xf32>
    %134 = arith.addf %132, %133 : vector<8x128xf32>
    %cst_51 = arith.constant 5.000000e-01 : f32
    %135 = vector.broadcast %cst_51 : f32 to vector<8x128xf32>
    %136 = arith.mulf %135, %134 : vector<8x128xf32>
    %cst_52 = arith.constant 0.707106769 : f32
    %137 = vector.broadcast %cst_52 : f32 to vector<8x128xf32>
    %138 = arith.mulf %134, %137 : vector<8x128xf32>
    %139 = math.erf %138 : vector<8x128xf32>
    %cst_53 = arith.constant 1.000000e+00 : f32
    %140 = vector.broadcast %cst_53 : f32 to vector<8x128xf32>
    %141 = arith.addf %140, %139 : vector<8x128xf32>
    %142 = arith.mulf %136, %141 : vector<8x128xf32>
    %c0_54 = arith.constant 0 : index
    %c0_55 = arith.constant 0 : index
    %c0_56 = arith.constant 0 : index
    %143 = vector.load %arg7[%c0_54, %c0_55, %c0_56] : memref<2x8x128xf32, #tpu.memory_space<vmem>>, vector<1x8x128xf32>
    %144 = vector.shape_cast %143 : vector<1x8x128xf32> to vector<8x128xf32>
    %145 = vector.shape_cast %142 : vector<8x128xf32> to vector<1x8x128xf32>
    tpu.vector_store %arg7[%c0_54, %c0_55, %c0_56], %145 {strides = array<i32>} : memref<2x8x128xf32, #tpu.memory_space<vmem>>, vector<1x8x128xf32>,
    %146 = vector.broadcast %107 : f32 to vector<8x128xf32>
    %147 = arith.subf %97, %146 : vector<8x128xf32>
    %148 = vector.broadcast %126 : f32 to vector<8x128xf32>
    %149 = arith.mulf %147, %148 : vector<8x128xf32>
    %150 = vector.broadcast %9 : vector<8x1xf32> to vector<8x128xf32>
    %151 = arith.mulf %149, %150 : vector<8x128xf32>
    %152 = vector.broadcast %10 : vector<8x1xf32> to vector<8x128xf32>
    %153 = arith.addf %151, %152 : vector<8x128xf32>
    %cst_57 = arith.constant 5.000000e-01 : f32
    %154 = vector.broadcast %cst_57 : f32 to vector<8x128xf32>
    %155 = arith.mulf %154, %153 : vector<8x128xf32>
    %cst_58 = arith.constant 0.707106769 : f32
    %156 = vector.broadcast %cst_58 : f32 to vector<8x128xf32>
    %157 = arith.mulf %153, %156 : vector<8x128xf32>
    %158 = math.erf %157 : vector<8x128xf32>
    %cst_59 = arith.constant 1.000000e+00 : f32
    %159 = vector.broadcast %cst_59 : f32 to vector<8x128xf32>
    %160 = arith.addf %159, %158 : vector<8x128xf32>
    %161 = arith.mulf %155, %160 : vector<8x128xf32>
    %c0_60 = arith.constant 0 : index
    %c0_61 = arith.constant 0 : index
    %c0_62 = arith.constant 0 : index
    %162 = vector.load %arg8[%c0_60, %c0_61, %c0_62] : memref<2x8x128xf32, #tpu.memory_space<vmem>>, vector<1x8x128xf32>
    %163 = vector.shape_cast %162 : vector<1x8x128xf32> to vector<8x128xf32>
    %164 = vector.shape_cast %161 : vector<8x128xf32> to vector<1x8x128xf32>
    tpu.vector_store %arg8[%c0_60, %c0_61, %c0_62], %164 {strides = array<i32>} : memref<2x8x128xf32, #tpu.memory_space<vmem>>, vector<1x8x128xf32>,
    %c1_63 = arith.constant 1 : index
    %c0_64 = arith.constant 0 : index
    %c0_65 = arith.constant 0 : index
    %165 = vector.load %arg1[%c1_63, %c0_64, %c0_65] : memref<2x4x129xf32, #tpu.memory_space<vmem>>, vector<1x4x129xf32>
    %166 = vector.shape_cast %165 : vector<1x4x129xf32> to vector<4x129xf32>
    %167 = vector.extract_strided_slice %166 {offsets = [0, 0], sizes = [4, 128], strides = [1, 1]} : vector<4x129xf32> to vector<4x128xf32>
    %168 = vector.extract_strided_slice %166 {offsets = [0, 1], sizes = [4, 128], strides = [1, 1]} : vector<4x129xf32> to vector<4x128xf32>
    %cst_66 = arith.constant dense<0.000000e+00> : vector<8x128xf32>
    %169 = tpu.matmul %0, %167, %cst_66 {dimension_numbers = #tpu.dot_dimension_numbers<[1], [0], [0], [1], [0, 0, 1, 1], [], []>} : vector<8x4xf32>, vector<4x128xf32>, vector<8x128xf32> -> vector<8x128xf32>
    %170 = vector.broadcast %5 : vector<8x1xf32> to vector<8x128xf32>
    %171 = arith.addf %169, %170 : vector<8x128xf32>
    %cst_67 = arith.constant dense<0.000000e+00> : vector<8x128xf32>
    %172 = tpu.matmul %1, %167, %cst_67 {dimension_numbers = #tpu.dot_dimension_numbers<[1], [0], [0], [1], [0, 0, 1, 1], [], []>} : vector<8x4xf32>, vector<4x128xf32>, vector<8x128xf32> -> vector<8x128xf32>
    %cst_68 = arith.constant dense<0.000000e+00> : vector<8x128xf32>
    %173 = tpu.matmul %2, %168, %cst_68 {dimension_numbers = #tpu.dot_dimension_numbers<[1], [0], [0], [1], [0, 0, 1, 1], [], []>} : vector<8x4xf32>, vector<4x128xf32>, vector<8x128xf32> -> vector<8x128xf32>
    %174 = arith.addf %172, %173 : vector<8x128xf32>
    %175 = vector.broadcast %5 : vector<8x1xf32> to vector<8x128xf32>
    %176 = arith.addf %174, %175 : vector<8x128xf32>
    %177 = vector.shape_cast %171 : vector<8x128xf32> to vector<1x8x128xf32>
    %cst_69 = arith.constant dense<0.000000e+00> : vector<1xf32>
    %178 = vector.multi_reduction <add>, %177, %cst_69 [1, 2] : vector<1x8x128xf32> to vector<1xf32>
    %179 = vector.shape_cast %178 : vector<1xf32> to vector<1x1x1xf32>
    %180 = vector.extract %179[0, 0, 0] : f32 from vector<1x1x1xf32>
    %181 = vector.shape_cast %176 : vector<8x128xf32> to vector<1x8x128xf32>
    %cst_70 = arith.constant dense<0.000000e+00> : vector<1xf32>
    %182 = vector.multi_reduction <add>, %181, %cst_70 [1, 2] : vector<1x8x128xf32> to vector<1xf32>
    %183 = vector.shape_cast %182 : vector<1xf32> to vector<1x1x1xf32>
    %184 = vector.extract %183[0, 0, 0] : f32 from vector<1x1x1xf32>
    %185 = arith.addf %180, %184 : f32
    %cst_71 = arith.constant 4.8828125E-4 : f32
    %186 = arith.mulf %185, %cst_71 : f32
    %187 = vector.broadcast %186 : f32 to vector<8x128xf32>
    %188 = arith.subf %171, %187 : vector<8x128xf32>
    %189 = arith.mulf %188, %188 : vector<8x128xf32>
    %190 = vector.shape_cast %189 : vector<8x128xf32> to vector<1x8x128xf32>
    %cst_72 = arith.constant dense<0.000000e+00> : vector<1xf32>
    %191 = vector.multi_reduction <add>, %190, %cst_72 [1, 2] : vector<1x8x128xf32> to vector<1xf32>
    %192 = vector.shape_cast %191 : vector<1xf32> to vector<1x1x1xf32>
    %193 = vector.extract %192[0, 0, 0] : f32 from vector<1x1x1xf32>
    %194 = vector.broadcast %186 : f32 to vector<8x128xf32>
    %195 = arith.subf %176, %194 : vector<8x128xf32>
    %196 = arith.mulf %195, %195 : vector<8x128xf32>
    %197 = vector.shape_cast %196 : vector<8x128xf32> to vector<1x8x128xf32>
    %cst_73 = arith.constant dense<0.000000e+00> : vector<1xf32>
    %198 = vector.multi_reduction <add>, %197, %cst_73 [1, 2] : vector<1x8x128xf32> to vector<1xf32>
    %199 = vector.shape_cast %198 : vector<1xf32> to vector<1x1x1xf32>
    %200 = vector.extract %199[0, 0, 0] : f32 from vector<1x1x1xf32>
    %201 = arith.addf %193, %200 : f32
    %cst_74 = arith.constant 4.8828125E-4 : f32
    %202 = arith.mulf %201, %cst_74 : f32
    %cst_75 = arith.constant 0.000000e+00 : f32
    %203 = arith.maximumf %202, %cst_75 : f32
    %cst_76 = arith.constant 9.99999974E-6 : f32
    %204 = arith.addf %203, %cst_76 : f32
    %205 = math.rsqrt %204 : f32
    %206 = vector.broadcast %186 : f32 to vector<8x128xf32>
    %207 = arith.subf %171, %206 : vector<8x128xf32>
    %208 = vector.broadcast %205 : f32 to vector<8x128xf32>
    %209 = arith.mulf %207, %208 : vector<8x128xf32>
    %210 = vector.broadcast %6 : vector<8x1xf32> to vector<8x128xf32>
    %211 = arith.mulf %209, %210 : vector<8x128xf32>
    %212 = vector.broadcast %7 : vector<8x1xf32> to vector<8x128xf32>
    %213 = arith.addf %211, %212 : vector<8x128xf32>
    %cst_77 = arith.constant 5.000000e-01 : f32
    %214 = vector.broadcast %cst_77 : f32 to vector<8x128xf32>
    %215 = arith.mulf %214, %213 : vector<8x128xf32>
    %cst_78 = arith.constant 0.707106769 : f32
    %216 = vector.broadcast %cst_78 : f32 to vector<8x128xf32>
    %217 = arith.mulf %213, %216 : vector<8x128xf32>
    %218 = math.erf %217 : vector<8x128xf32>
    %cst_79 = arith.constant 1.000000e+00 : f32
    %219 = vector.broadcast %cst_79 : f32 to vector<8x128xf32>
    %220 = arith.addf %219, %218 : vector<8x128xf32>
    %221 = arith.mulf %215, %220 : vector<8x128xf32>
    %222 = vector.broadcast %186 : f32 to vector<8x128xf32>
    %223 = arith.subf %176, %222 : vector<8x128xf32>
    %224 = vector.broadcast %205 : f32 to vector<8x128xf32>
    %225 = arith.mulf %223, %224 : vector<8x128xf32>
    %226 = vector.broadcast %6 : vector<8x1xf32> to vector<8x128xf32>
    %227 = arith.mulf %225, %226 : vector<8x128xf32>
    %228 = vector.broadcast %7 : vector<8x1xf32> to vector<8x128xf32>
    %229 = arith.addf %227, %228 : vector<8x128xf32>
    %cst_80 = arith.constant 5.000000e-01 : f32
    %230 = vector.broadcast %cst_80 : f32 to vector<8x128xf32>
    %231 = arith.mulf %230, %229 : vector<8x128xf32>
    %cst_81 = arith.constant 0.707106769 : f32
    %232 = vector.broadcast %cst_81 : f32 to vector<8x128xf32>
    %233 = arith.mulf %229, %232 : vector<8x128xf32>
    %234 = math.erf %233 : vector<8x128xf32>
    %cst_82 = arith.constant 1.000000e+00 : f32
    %235 = vector.broadcast %cst_82 : f32 to vector<8x128xf32>
    %236 = arith.addf %235, %234 : vector<8x128xf32>
    %237 = arith.mulf %231, %236 : vector<8x128xf32>
    %c1_83 = arith.constant 1 : index
    %c0_84 = arith.constant 0 : index
    %c0_85 = arith.constant 0 : index
    %238 = vector.load %arg2[%c1_83, %c0_84, %c0_85] : memref<2x4x128xf32, #tpu.memory_space<vmem>>, vector<1x4x128xf32>
    %239 = vector.shape_cast %238 : vector<1x4x128xf32> to vector<4x128xf32>
    %c1_86 = arith.constant 1 : index
    %c0_87 = arith.constant 0 : index
    %c0_88 = arith.constant 0 : index
    %240 = vector.load %arg3[%c1_86, %c0_87, %c0_88] : memref<2x4x128xf32, #tpu.memory_space<vmem>>, vector<1x4x128xf32>
    %241 = vector.shape_cast %240 : vector<1x4x128xf32> to vector<4x128xf32>
    %cst_89 = arith.constant dense<0.000000e+00> : vector<8x128xf32>
    %242 = tpu.matmul %3, %221, %cst_89 {dimension_numbers = #tpu.dot_dimension_numbers<[1], [0], [0], [1], [0, 0, 1, 1], [], []>} : vector<8x8xf32>, vector<8x128xf32>, vector<8x128xf32> -> vector<8x128xf32>
    %cst_90 = arith.constant dense<0.000000e+00> : vector<8x128xf32>
    %243 = tpu.matmul %4, %239, %cst_90 {dimension_numbers = #tpu.dot_dimension_numbers<[1], [0], [0], [1], [0, 0, 1, 1], [], []>} : vector<8x4xf32>, vector<4x128xf32>, vector<8x128xf32> -> vector<8x128xf32>
    %244 = arith.addf %242, %243 : vector<8x128xf32>
    %245 = vector.broadcast %8 : vector<8x1xf32> to vector<8x128xf32>
    %246 = arith.addf %244, %245 : vector<8x128xf32>
    %cst_91 = arith.constant dense<0.000000e+00> : vector<8x128xf32>
    %247 = tpu.matmul %3, %237, %cst_91 {dimension_numbers = #tpu.dot_dimension_numbers<[1], [0], [0], [1], [0, 0, 1, 1], [], []>} : vector<8x8xf32>, vector<8x128xf32>, vector<8x128xf32> -> vector<8x128xf32>
    %cst_92 = arith.constant dense<0.000000e+00> : vector<8x128xf32>
    %248 = tpu.matmul %4, %241, %cst_92 {dimension_numbers = #tpu.dot_dimension_numbers<[1], [0], [0], [1], [0, 0, 1, 1], [], []>} : vector<8x4xf32>, vector<4x128xf32>, vector<8x128xf32> -> vector<8x128xf32>
    %249 = arith.addf %247, %248 : vector<8x128xf32>
    %250 = vector.broadcast %8 : vector<8x1xf32> to vector<8x128xf32>
    %251 = arith.addf %249, %250 : vector<8x128xf32>
    %252 = vector.shape_cast %246 : vector<8x128xf32> to vector<1x8x128xf32>
    %cst_93 = arith.constant dense<0.000000e+00> : vector<1xf32>
    %253 = vector.multi_reduction <add>, %252, %cst_93 [1, 2] : vector<1x8x128xf32> to vector<1xf32>
    %254 = vector.shape_cast %253 : vector<1xf32> to vector<1x1x1xf32>
    %255 = vector.extract %254[0, 0, 0] : f32 from vector<1x1x1xf32>
    %256 = vector.shape_cast %251 : vector<8x128xf32> to vector<1x8x128xf32>
    %cst_94 = arith.constant dense<0.000000e+00> : vector<1xf32>
    %257 = vector.multi_reduction <add>, %256, %cst_94 [1, 2] : vector<1x8x128xf32> to vector<1xf32>
    %258 = vector.shape_cast %257 : vector<1xf32> to vector<1x1x1xf32>
    %259 = vector.extract %258[0, 0, 0] : f32 from vector<1x1x1xf32>
    %260 = arith.addf %255, %259 : f32
    %cst_95 = arith.constant 4.8828125E-4 : f32
    %261 = arith.mulf %260, %cst_95 : f32
    %262 = vector.broadcast %261 : f32 to vector<8x128xf32>
    %263 = arith.subf %246, %262 : vector<8x128xf32>
    %264 = arith.mulf %263, %263 : vector<8x128xf32>
    %265 = vector.shape_cast %264 : vector<8x128xf32> to vector<1x8x128xf32>
    %cst_96 = arith.constant dense<0.000000e+00> : vector<1xf32>
    %266 = vector.multi_reduction <add>, %265, %cst_96 [1, 2] : vector<1x8x128xf32> to vector<1xf32>
    %267 = vector.shape_cast %266 : vector<1xf32> to vector<1x1x1xf32>
    %268 = vector.extract %267[0, 0, 0] : f32 from vector<1x1x1xf32>
    %269 = vector.broadcast %261 : f32 to vector<8x128xf32>
    %270 = arith.subf %251, %269 : vector<8x128xf32>
    %271 = arith.mulf %270, %270 : vector<8x128xf32>
    %272 = vector.shape_cast %271 : vector<8x128xf32> to vector<1x8x128xf32>
    %cst_97 = arith.constant dense<0.000000e+00> : vector<1xf32>
    %273 = vector.multi_reduction <add>, %272, %cst_97 [1, 2] : vector<1x8x128xf32> to vector<1xf32>
    %274 = vector.shape_cast %273 : vector<1xf32> to vector<1x1x1xf32>
    %275 = vector.extract %274[0, 0, 0] : f32 from vector<1x1x1xf32>
    %276 = arith.addf %268, %275 : f32
    %cst_98 = arith.constant 4.8828125E-4 : f32
    %277 = arith.mulf %276, %cst_98 : f32
    %cst_99 = arith.constant 0.000000e+00 : f32
    %278 = arith.maximumf %277, %cst_99 : f32
    %cst_100 = arith.constant 9.99999974E-6 : f32
    %279 = arith.addf %278, %cst_100 : f32
    %280 = math.rsqrt %279 : f32
    %281 = vector.broadcast %261 : f32 to vector<8x128xf32>
    %282 = arith.subf %246, %281 : vector<8x128xf32>
    %283 = vector.broadcast %280 : f32 to vector<8x128xf32>
    %284 = arith.mulf %282, %283 : vector<8x128xf32>
    %285 = vector.broadcast %9 : vector<8x1xf32> to vector<8x128xf32>
    %286 = arith.mulf %284, %285 : vector<8x128xf32>
    %287 = vector.broadcast %10 : vector<8x1xf32> to vector<8x128xf32>
    %288 = arith.addf %286, %287 : vector<8x128xf32>
    %cst_101 = arith.constant 5.000000e-01 : f32
    %289 = vector.broadcast %cst_101 : f32 to vector<8x128xf32>
    %290 = arith.mulf %289, %288 : vector<8x128xf32>
    %cst_102 = arith.constant 0.707106769 : f32
    %291 = vector.broadcast %cst_102 : f32 to vector<8x128xf32>
    %292 = arith.mulf %288, %291 : vector<8x128xf32>
    %293 = math.erf %292 : vector<8x128xf32>
    %cst_103 = arith.constant 1.000000e+00 : f32
    %294 = vector.broadcast %cst_103 : f32 to vector<8x128xf32>
    %295 = arith.addf %294, %293 : vector<8x128xf32>
    %296 = arith.mulf %290, %295 : vector<8x128xf32>
    %c1_104 = arith.constant 1 : index
    %c0_105 = arith.constant 0 : index
    %c0_106 = arith.constant 0 : index
    %297 = vector.load %arg7[%c1_104, %c0_105, %c0_106] : memref<2x8x128xf32, #tpu.memory_space<vmem>>, vector<1x8x128xf32>
    %298 = vector.shape_cast %297 : vector<1x8x128xf32> to vector<8x128xf32>
    %299 = vector.shape_cast %296 : vector<8x128xf32> to vector<1x8x128xf32>
    tpu.vector_store %arg7[%c1_104, %c0_105, %c0_106], %299 {strides = array<i32>} : memref<2x8x128xf32, #tpu.memory_space<vmem>>, vector<1x8x128xf32>,
    %300 = vector.broadcast %261 : f32 to vector<8x128xf32>
    %301 = arith.subf %251, %300 : vector<8x128xf32>
    %302 = vector.broadcast %280 : f32 to vector<8x128xf32>
    %303 = arith.mulf %301, %302 : vector<8x128xf32>
    %304 = vector.broadcast %9 : vector<8x1xf32> to vector<8x128xf32>
    %305 = arith.mulf %303, %304 : vector<8x128xf32>
    %306 = vector.broadcast %10 : vector<8x1xf32> to vector<8x128xf32>
    %307 = arith.addf %305, %306 : vector<8x128xf32>
    %cst_107 = arith.constant 5.000000e-01 : f32
    %308 = vector.broadcast %cst_107 : f32 to vector<8x128xf32>
    %309 = arith.mulf %308, %307 : vector<8x128xf32>
    %cst_108 = arith.constant 0.707106769 : f32
    %310 = vector.broadcast %cst_108 : f32 to vector<8x128xf32>
    %311 = arith.mulf %307, %310 : vector<8x128xf32>
    %312 = math.erf %311 : vector<8x128xf32>
    %cst_109 = arith.constant 1.000000e+00 : f32
    %313 = vector.broadcast %cst_109 : f32 to vector<8x128xf32>
    %314 = arith.addf %313, %312 : vector<8x128xf32>
    %315 = arith.mulf %309, %314 : vector<8x128xf32>
    %c1_110 = arith.constant 1 : index
    %c0_111 = arith.constant 0 : index
    %c0_112 = arith.constant 0 : index
    %316 = vector.load %arg8[%c1_110, %c0_111, %c0_112] : memref<2x8x128xf32, #tpu.memory_space<vmem>>, vector<1x8x128xf32>
    %317 = vector.shape_cast %316 : vector<1x8x128xf32> to vector<8x128xf32>
    %318 = vector.shape_cast %315 : vector<8x128xf32> to vector<1x8x128xf32>
    tpu.vector_store %arg8[%c1_110, %c0_111, %c0_112], %318 {strides = array<i32>} : memref<2x8x128xf32, #tpu.memory_space<vmem>>, vector<1x8x128xf32>,
    return
  }
  func.func @transform_0(%arg0: i32) -> (i32, i32, i32) {
    %c0_i32 = arith.constant 0 : i32
    %c0_i32_0 = arith.constant 0 : i32
    %c0_i32_1 = arith.constant 0 : i32
    return %arg0, %c0_i32, %c0_i32_0 : i32, i32, i32
  }
  func.func @transform_1(%arg0: i32) -> (i32, i32, i32) {
    %c0_i32 = arith.constant 0 : i32
    %c0_i32_0 = arith.constant 0 : i32
    %c0_i32_1 = arith.constant 0 : i32
    return %arg0, %c0_i32, %c0_i32_0 : i32, i32, i32
  }
  func.func @transform_2(%arg0: i32) -> (i32, i32, i32) {
    %c0_i32 = arith.constant 0 : i32
    %c0_i32_0 = arith.constant 0 : i32
    %c0_i32_1 = arith.constant 0 : i32
    return %arg0, %c0_i32, %c0_i32_0 : i32, i32, i32
  }
  func.func @transform_3(%arg0: i32) -> (i32, i32) {
    %c0_i32 = arith.constant 0 : i32
    %c0_i32_0 = arith.constant 0 : i32
    %c0_i32_1 = arith.constant 0 : i32
    return %c0_i32, %c0_i32_0 : i32, i32
  }
  func.func @transform_4(%arg0: i32) -> (i32, i32) {
    %c0_i32 = arith.constant 0 : i32
    %c0_i32_0 = arith.constant 0 : i32
    %c0_i32_1 = arith.constant 0 : i32
    return %c0_i32, %c0_i32_0 : i32, i32
  }
  func.func @transform_5(%arg0: i32) -> (i32, i32) {
    %c0_i32 = arith.constant 0 : i32
    %c0_i32_0 = arith.constant 0 : i32
    %c0_i32_1 = arith.constant 0 : i32
    return %c0_i32, %c0_i32_0 : i32, i32
  }
  func.func @transform_6(%arg0: i32) -> (i32, i32, i32) {
    %c0_i32 = arith.constant 0 : i32
    %c0_i32_0 = arith.constant 0 : i32
    %c0_i32_1 = arith.constant 0 : i32
    return %arg0, %c0_i32, %c0_i32_0 : i32, i32, i32
  }
  func.func @transform_7(%arg0: i32) -> (i32, i32, i32) {
    %c0_i32 = arith.constant 0 : i32
    %c0_i32_0 = arith.constant 0 : i32
    %c0_i32_1 = arith.constant 0 : i32
    return %arg0, %c0_i32, %c0_i32_0 : i32, i32, i32
  }
}

</mosaic_0001>

<llo_original>
// kernel: _lambda_.1
$region0: #{_lambda_.1}
  #allocation0 [shape = 'u32[]', space=smem, size = 0x4, offset = 0x4, fixed_abs, tag = 'smem constant byte address 0x4 - core index']
  #allocation1 [shape = 'u32[72,128]{1,0:T(1,128)}', space=vmem, size = 0x9000, scoped, tag = 'internal scratch']
  %s0 = inlined_call_operand.vmem [shape: f32[4,4,129], index: 0, kind: input, shape index: {}]
  %s1 = inlined_call_operand.vmem [shape: f32[4,4,128], index: 1, kind: input, shape index: {}]
  %s2 = inlined_call_operand.vmem [shape: f32[4,4,128], index: 2, kind: input, shape index: {}]
  %s3 = inlined_call_operand.vmem [shape: f32[24,4], index: 3, kind: input, shape index: {}]
  %s4 = inlined_call_operand.vmem [shape: f32[8,12], index: 4, kind: input, shape index: {}]
  %s5 = inlined_call_operand.vmem [shape: f32[8,8], index: 5, kind: input, shape index: {}]
  %s6 = inlined_call_operand.vmem [shape: f32[4,8,128], index: 6, kind: output, shape index: {0}]
  %s7 = inlined_call_operand.vmem [shape: f32[4,8,128], index: 7, kind: output, shape index: {1}]
  %8 = xla_tuple %s6, %s7
  %s9 = sld [smem:[#allocation0]]
  $region65: #{_lambda_.1} parent=0
    _
  %s11 = ssub.s32 1, %s9
  %s12 = scalar_select 0, %s11, %s9
  loop: start=0, step=1, limit=4
  $region2: #{_lambda_.1} parent=0 // loop_pre_header
    _
  $region3: #{_lambda_.1} parent=0 // loop_header
    %s14 = sphi 0, %s18
    %p15 = scmp.ge.s32.totalorder %s14, 4
    %s24 = sphi 0, %s26
    %s27 = sphi 0, %s24
    %s28 = sphi 0, %s27
    %s44 = sphi 0, %s28
    %s50 = sphi 0, %s52
    %s53 = sphi 0, %s50
    %s54 = sphi 0, %s53
    %s70 = sphi 0, %s54
    %s76 = sphi 0, %s78
    %s79 = sphi 0, %s76
    %s80 = sphi 0, %s79
    %s96 = sphi 0, %s80
    %s100 = sphi 0, %s100
    %s102 = sphi 0, %s100
    %s103 = sphi 0, %s102
    %s117 = sphi 0, %s103
    %s121 = sphi 0, %s121
    %s123 = sphi 0, %s121
    %s124 = sphi 0, %s123
    %s138 = sphi 0, %s124
    %s142 = sphi 0, %s142
    %s144 = sphi 0, %s142
    %s145 = sphi 0, %s144
    %s159 = sphi 0, %s145
    %s165 = sphi 0, %s167
    %s168 = sphi 0, %s165
    %s169 = sphi 0, %s168
    %s185 = sphi 0, %s169
    %s191 = sphi 0, %s193
    %s194 = sphi 0, %s191
    %s195 = sphi 0, %s194
    %s211 = sphi 0, %s195
  $region4: #{_lambda_.1} parent=0 // loop_header_branch
    %17 = sbr.rel (%p15) target = $region8
  $region5: #{_lambda_.1} parent=0 // loop_body
    %s19 = ssub.s32 %s14, 1
    %s20 = ssub.s32 %s14, 2
    %s21 = sadd.s32 %s14, 1
    %s22 = ssub.s32 %s14, %s21
    %p23 = scmp.eq.s32.totalorder %s22, 0
    %s25 = sadd.s32 %s24, 1
    %s26 = scalar_select %p23, %s24, %s25
    %p29 = pneg %p23
    %p30 = scmp.eq.s32.totalorder %s14, 1
    %p31 = por %p29, %p30
    %p32 = scmp.ne.s32.totalorder %s24, %s27
    %p33 = scmp.eq.s32.totalorder %s14, 0
    %p34 = por %p32, %p33
    %p35 = scmp.ne.s32.totalorder %s24, %s27
    %p36 = scmp.eq.s32.totalorder %s19, 1
    %p37 = por %p35, %p36
    %p38 = scmp.ne.s32.totalorder %s27, %s28
    %p39 = scmp.eq.s32.totalorder %s19, 0
    %p40 = por %p38, %p39
    %p41 = scmp.ne.s32.totalorder %s27, %s28
    %p42 = scmp.eq.s32.totalorder %s20, 1
    %p43 = por %p41, %p42
    %p45 = scmp.ne.s32.totalorder %s28, %s44
    %p46 = scmp.eq.s32.totalorder %s20, 0
    %p47 = por %p45, %p46
    %s48 = ssub.s32 %s14, %s21
    %p49 = scmp.eq.s32.totalorder %s48, 0
    %s51 = sadd.s32 %s50, 1
    %s52 = scalar_select %p49, %s50, %s51
    %p55 = pneg %p49
    %p56 = scmp.eq.s32.totalorder %s14, 1
    %p57 = por %p55, %p56
    %p58 = scmp.ne.s32.totalorder %s50, %s53
    %p59 = scmp.eq.s32.totalorder %s14, 0
    %p60 = por %p58, %p59
    %p61 = scmp.ne.s32.totalorder %s50, %s53
    %p62 = scmp.eq.s32.totalorder %s19, 1
    %p63 = por %p61, %p62
    %p64 = scmp.ne.s32.totalorder %s53, %s54
    %p65 = scmp.eq.s32.totalorder %s19, 0
    %p66 = por %p64, %p65
    %p67 = scmp.ne.s32.totalorder %s53, %s54
    %p68 = scmp.eq.s32.totalorder %s20, 1
    %p69 = por %p67, %p68
    %p71 = scmp.ne.s32.totalorder %s54, %s70
    %p72 = scmp.eq.s32.totalorder %s20, 0
    %p73 = por %p71, %p72
    %s74 = ssub.s32 %s14, %s21
    %p75 = scmp.eq.s32.totalorder %s74, 0
    %s77 = sadd.s32 %s76, 1
    %s78 = scalar_select %p75, %s76, %s77
    %p81 = pneg %p75
    %p82 = scmp.eq.s32.totalorder %s14, 1
    %p83 = por %p81, %p82
    %p84 = scmp.ne.s32.totalorder %s76, %s79
    %p85 = scmp.eq.s32.totalorder %s14, 0
    %p86 = por %p84, %p85
    %p87 = scmp.ne.s32.totalorder %s76, %s79
    %p88 = scmp.eq.s32.totalorder %s19, 1
    %p89 = por %p87, %p88
    %p90 = scmp.ne.s32.totalorder %s79, %s80
    %p91 = scmp.eq.s32.totalorder %s19, 0
    %p92 = por %p90, %p91
    %p93 = scmp.ne.s32.totalorder %s79, %s80
    %p94 = scmp.eq.s32.totalorder %s20, 1
    %p95 = por %p93, %p94
    %p97 = scmp.ne.s32.totalorder %s80, %s96
    %p98 = scmp.eq.s32.totalorder %s20, 0
    %p99 = por %p97, %p98
    %s101 = sadd.s32 %s100, 1
    %p104 = scmp.eq.s32.totalorder %s14, 1
    %p105 = scmp.ne.s32.totalorder %s100, %s102
    %p106 = scmp.eq.s32.totalorder %s14, 0
    %p107 = por %p105, %p106
    %p108 = scmp.ne.s32.totalorder %s100, %s102
    %p109 = scmp.eq.s32.totalorder %s19, 1
    %p110 = por %p108, %p109
    %p111 = scmp.ne.s32.totalorder %s102, %s103
    %p112 = scmp.eq.s32.totalorder %s19, 0
    %p113 = por %p111, %p112
    %p114 = scmp.ne.s32.totalorder %s102, %s103
    %p115 = scmp.eq.s32.totalorder %s20, 1
    %p116 = por %p114, %p115
    %p118 = scmp.ne.s32.totalorder %s103, %s117
    %p119 = scmp.eq.s32.totalorder %s20, 0
    %p120 = por %p118, %p119
    %s122 = sadd.s32 %s121, 1
    %p125 = scmp.eq.s32.totalorder %s14, 1
    %p126 = scmp.ne.s32.totalorder %s121, %s123
    %p127 = scmp.eq.s32.totalorder %s14, 0
    %p128 = por %p126, %p127
    %p129 = scmp.ne.s32.totalorder %s121, %s123
    %p130 = scmp.eq.s32.totalorder %s19, 1
    %p131 = por %p129, %p130
    %p132 = scmp.ne.s32.totalorder %s123, %s124
    %p133 = scmp.eq.s32.totalorder %s19, 0
    %p134 = por %p132, %p133
    %p135 = scmp.ne.s32.totalorder %s123, %s124
    %p136 = scmp.eq.s32.totalorder %s20, 1
    %p137 = por %p135, %p136
    %p139 = scmp.ne.s32.totalorder %s124, %s138
    %p140 = scmp.eq.s32.totalorder %s20, 0
    %p141 = por %p139, %p140
    %s143 = sadd.s32 %s142, 1
    %p146 = scmp.eq.s32.totalorder %s14, 1
    %p147 = scmp.ne.s32.totalorder %s142, %s144
    %p148 = scmp.eq.s32.totalorder %s14, 0
    %p149 = por %p147, %p148
    %p150 = scmp.ne.s32.totalorder %s142, %s144
    %p151 = scmp.eq.s32.totalorder %s19, 1
    %p152 = por %p150, %p151
    %p153 = scmp.ne.s32.totalorder %s144, %s145
    %p154 = scmp.eq.s32.totalorder %s19, 0
    %p155 = por %p153, %p154
    %p156 = scmp.ne.s32.totalorder %s144, %s145
    %p157 = scmp.eq.s32.totalorder %s20, 1
    %p158 = por %p156, %p157
    %p160 = scmp.ne.s32.totalorder %s145, %s159
    %p161 = scmp.eq.s32.totalorder %s20, 0
    %p162 = por %p160, %p161
    %s163 = ssub.s32 %s14, %s21
    %p164 = scmp.eq.s32.totalorder %s163, 0
    %s166 = sadd.s32 %s165, 1
    %s167 = scalar_select %p164, %s165, %s166
    %p170 = pneg %p164
    %p171 = scmp.eq.s32.totalorder %s14, 1
    %p172 = por %p170, %p171
    %p173 = scmp.ne.s32.totalorder %s165, %s168
    %p174 = scmp.eq.s32.totalorder %s14, 0
    %p175 = por %p173, %p174
    %p176 = scmp.ne.s32.totalorder %s165, %s168
    %p177 = scmp.eq.s32.totalorder %s19, 1
    %p178 = por %p176, %p177
    %p179 = scmp.ne.s32.totalorder %s168, %s169
    %p180 = scmp.eq.s32.totalorder %s19, 0
    %p181 = por %p179, %p180
    %p182 = scmp.ne.s32.totalorder %s168, %s169
    %p183 = scmp.eq.s32.totalorder %s20, 1
    %p184 = por %p182, %p183
    %p186 = scmp.ne.s32.totalorder %s169, %s185
    %p187 = scmp.eq.s32.totalorder %s20, 0
    %p188 = por %p186, %p187
    %s189 = ssub.s32 %s14, %s21
    %p190 = scmp.eq.s32.totalorder %s189, 0
    %s192 = sadd.s32 %s191, 1
    %s193 = scalar_select %p190, %s191, %s192
    %p196 = pneg %p190
    %p197 = scmp.eq.s32.totalorder %s14, 1
    %p198 = por %p196, %p197
    %p199 = scmp.ne.s32.totalorder %s191, %s194
    %p200 = scmp.eq.s32.totalorder %s14, 0
    %p201 = por %p199, %p200
    %p202 = scmp.ne.s32.totalorder %s191, %s194
    %p203 = scmp.eq.s32.totalorder %s19, 1
    %p204 = por %p202, %p203
    %p205 = scmp.ne.s32.totalorder %s194, %s195
    %p206 = scmp.eq.s32.totalorder %s19, 0
    %p207 = por %p205, %p206
    %p208 = scmp.ne.s32.totalorder %s194, %s195
    %p209 = scmp.eq.s32.totalorder %s20, 1
    %p210 = por %p208, %p209
    %p212 = scmp.ne.s32.totalorder %s195, %s211
    %p213 = scmp.eq.s32.totalorder %s20, 0
    %p214 = por %p212, %p213
    %p215 = scmp.le.s32.totalorder 1, %s14
    %p216 = scmp.lt.s32.totalorder %s14, 3
    %p217 = pnand %p215, %p216
    %p218 = pneg %p217
    // Predicated region
    $region9: #{_lambda_.1} parent=5 // pred_check
      _
    $region10: #{_lambda_.1} parent=5 // pred_check_branch
      %220 = sbr.rel (%p217) target = $region12
    $region11: #{_lambda_.1} parent=5 // pred_region
      %s221 = ssub.s32 %s14, 1
      // Predicated region
      $region13: #{_lambda_.1} parent=11 // pred_check
        %p222 = pneg %p113
      $region14: #{_lambda_.1} parent=11 // pred_check_branch
        %224 = sbr.rel (%p222) target = $region16
      $region15: #{_lambda_.1} parent=11 // pred_region
        _
      $region16: #{_lambda_.1} parent=11 // pred_fallthru
        _
      // Predicated region
      $region17: #{_lambda_.1} parent=11 // pred_check
        %p225 = pneg %p134
      $region18: #{_lambda_.1} parent=11 // pred_check_branch
        %227 = sbr.rel (%p225) target = $region20
      $region19: #{_lambda_.1} parent=11 // pred_region
        _
      $region20: #{_lambda_.1} parent=11 // pred_fallthru
        _
      // Predicated region
      $region21: #{_lambda_.1} parent=11 // pred_check
        %p228 = pneg %p155
      $region22: #{_lambda_.1} parent=11 // pred_check_branch
        %230 = sbr.rel (%p228) target = $region24
      $region23: #{_lambda_.1} parent=11 // pred_region
        _
      $region24: #{_lambda_.1} parent=11 // pred_fallthru
        _
    $region12: #{_lambda_.1} parent=5 // pred_fallthru
      _
    %p231 = scmp.lt.s32.totalorder %s14, 2
    // Predicated region
    $region25: #{_lambda_.1} parent=5 // pred_check
      %p232 = pneg %p231
    $region26: #{_lambda_.1} parent=5 // pred_check_branch
      %234 = sbr.rel (%p232) target = $region28
    $region27: #{_lambda_.1} parent=5 // pred_region
      // Predicated region
      $region29: #{_lambda_.1} parent=27 // pred_check
        %p235 = pneg %p34
      $region30: #{_lambda_.1} parent=27 // pred_check_branch
        %237 = sbr.rel (%p235) target = $region32
      $region31: #{_lambda_.1} parent=27 // pred_region
        %s238 = smul.u32 2, %s14
        %p239 = scmp.lt.s32.totalorder %s238, 3
        %s240 = scalar_select %p239, %s238, 3
        %s241 = smul.addr %s240, 2
        %s242 = smul.addr %s241, 4
        %s243 = scalar_lea.vmem %s0, %s242
        %s244 = smul.u32 2, %s14
      $region32: #{_lambda_.1} parent=27 // pred_fallthru
        _
      // Predicated region
      $region33: #{_lambda_.1} parent=27 // pred_check
        %p245 = pneg %p60
      $region34: #{_lambda_.1} parent=27 // pred_check_branch
        %247 = sbr.rel (%p245) target = $region36
      $region35: #{_lambda_.1} parent=27 // pred_region
        %s248 = smul.u32 2, %s14
        %p249 = scmp.lt.s32.totalorder %s248, 3
        %s250 = scalar_select %p249, %s248, 3
        %s251 = smul.addr %s250, 4
        %s252 = scalar_lea.vmem %s1, %s251
        %s253 = smul.u32 2, %s14
      $region36: #{_lambda_.1} parent=27 // pred_fallthru
        _
      // Predicated region
      $region37: #{_lambda_.1} parent=27 // pred_check
        %p254 = pneg %p86
      $region38: #{_lambda_.1} parent=27 // pred_check_branch
        %256 = sbr.rel (%p254) target = $region40
      $region39: #{_lambda_.1} parent=27 // pred_region
        %s257 = smul.u32 2, %s14
        %p258 = scmp.lt.s32.totalorder %s257, 3
        %s259 = scalar_select %p258, %s257, 3
        %s260 = smul.addr %s259, 4
        %s261 = scalar_lea.vmem %s2, %s260
        %s262 = smul.u32 2, %s14
      $region40: #{_lambda_.1} parent=27 // pred_fallthru
        _
    $region28: #{_lambda_.1} parent=5 // pred_fallthru
      _
    %p263 = scmp.le.s32.totalorder 1, %s14
    %p264 = scmp.lt.s32.totalorder %s14, 3
    %p265 = pnand %p263, %p264
    %p266 = pneg %p265
    // Predicated region
    $region41: #{_lambda_.1} parent=5 // pred_check
      _
    $region42: #{_lambda_.1} parent=5 // pred_check_branch
      %268 = sbr.rel (%p265) target = $region44
    $region43: #{_lambda_.1} parent=5 // pred_region
      %s269 = ssub.s32 %s14, 1
      %s270 = smul.u32 2, %s19
      %p271 = scmp.lt.s32.totalorder %s270, 3
      %s272 = scalar_select %p271, %s270, 3
      %s273 = smul.addr %s272, 2
      %s274 = smul.addr %s273, 4
      %s275 = scalar_lea.vmem %s0, %s274
      %p276 = pneg %p40
      %p277 = pneg %p37
      %s278 = smul.u32 2, %s19
      %p279 = scmp.lt.s32.totalorder %s278, 3
      %s280 = scalar_select %p279, %s278, 3
      %s281 = smul.addr %s280, 4
      %s282 = scalar_lea.vmem %s1, %s281
      %p283 = pneg %p66
      %p284 = pneg %p63
      %s285 = smul.u32 2, %s19
      %p286 = scmp.lt.s32.totalorder %s285, 3
      %s287 = scalar_select %p286, %s285, 3
      %s288 = smul.addr %s287, 4
      %s289 = scalar_lea.vmem %s2, %s288
      %p290 = pneg %p92
      %p291 = pneg %p89
      %p292 = pneg %p113
      %p293 = pneg %p110
      %p294 = pneg %p134
      %p295 = pneg %p131
      %p296 = pneg %p155
      %p297 = pneg %p152
      %p298 = pneg %p181
      %p299 = pneg %p178
      %s300 = smul.u32 2, %s19
      %p301 = scmp.lt.s32.totalorder %s300, 3
      %s302 = scalar_select %p301, %s300, 3
      %s303 = smul.addr %s302, 8
      %s304 = scalar_lea.vmem %s6, %s303
      %p305 = pneg %p207
      %p306 = pneg %p204
      %s307 = smul.u32 2, %s19
      %p308 = scmp.lt.s32.totalorder %s307, 3
      %s309 = scalar_select %p308, %s307, 3
      %s310 = smul.addr %s309, 8
      %s311 = scalar_lea.vmem %s7, %s310
      %s312 = smul.u32 2, %s19
      %p313 = scmp.lt.s32.totalorder %s312, 3
      %s314 = scalar_select %p313, %s312, 3
      %s315 = smul.addr %s314, 2
      %s316 = smul.addr %s315, 4
      %s317 = scalar_lea.vmem %s0, %s316
      %s318 = smul.u32 2, %s19
      %s319 = smul.u32 2, %s19
      %p320 = scmp.lt.s32.totalorder %s319, 3
      %s321 = scalar_select %p320, %s319, 3
      %s322 = smul.addr %s321, 4
      %s323 = scalar_lea.vmem %s1, %s322
      %s324 = smul.u32 2, %s19
      %s325 = smul.u32 2, %s19
      %p326 = scmp.lt.s32.totalorder %s325, 3
      %s327 = scalar_select %p326, %s325, 3
      %s328 = smul.addr %s327, 4
      %s329 = scalar_lea.vmem %s2, %s328
      %s330 = smul.u32 2, %s19
      %s331 = smul.u32 2, %s19
      %p332 = scmp.lt.s32.totalorder %s331, 3
      %s333 = scalar_select %p332, %s331, 3
      %s334 = smul.addr %s333, 8
      %s335 = scalar_lea.vmem %s6, %s334
      %s336 = smul.u32 2, %s19
      %s337 = smul.u32 2, %s19
      %p338 = scmp.lt.s32.totalorder %s337, 3
      %s339 = scalar_select %p338, %s337, 3
      %s340 = smul.addr %s339, 8
      %s341 = scalar_lea.vmem %s7, %s340
      %s342 = smul.u32 2, %s19
      %v343 = vld [vmem:[%s3] sm:$0xff]
      %v344 = vld [vmem:[%s3 + $0x8] sm:$0xff]
      %v345 = vld [vmem:[%s3 + $0x10] sm:$0xff]
      %v346 = vld [vmem:[%s4] sm:$0xff]
      %v347 = vld [vmem:[%s5] sm:$0xff]
      %v348 = vld [vmem:[%s317] sm:$0xff]
      %350 = vset.pattern.permute.xlu0 0
      %351 = vperm.xlu0 %350, %v347
      %v352 = vpop.permute.xlu0 %351
      %vm354 = vcmask 31744
      %v356 = vsel %vm354, %v343, 0
      %vm358 = vcmask 1043456
      %v360 = vsel %vm358, %v348, 0
      %362 = vmatpush.msra.mxu0 0.0
      %363 = vmatpush.msra.mxu0 0.0
      %364 = vmatpush.msra.mxu0 0.0
      %365 = vmatpush.msra.mxu0 0.0
      %366 = vmatpush.msra.mxu0 0.0
      %367 = vmatpush.msra.mxu0 0.0
      %368 = vmatpush.msra.mxu0 0.0
      %369 = vmatpush.msra.mxu0 0.0
      %370 = vmatpush.msra.mxu0 0.0
      %371 = vmatpush.msra.mxu0 0.0
      %372 = vmatpush.msra.mxu0 0.0
      %373 = vmatpush.msra.mxu0 0.0
      %374 = vmatpush.msra.mxu0 0.0
      %375 = vmatpush.msra.mxu0 0.0
      %376 = vmatpush.msra.mxu0 0.0
      %377 = vmatpush.msra.mxu0 %v360
      %378 = vmatmul.f32.gmra.mxu0 %v356
      %v379 = vpop.f32.mrf.mxu0
      %v380 = vadd.f32 %v352, %v379
      %381 = vdwg.mxu0
      %382 = vst [vmem:[#allocation1] ss:$2 sm:$0xff] %v348
      %v383 = vld.sshfl [vmem:[#allocation1] sm:$0xff pattern:$0x75316420]
      %v384 = vld.sshfl [vmem:[#allocation1 + $0x8] sm:$0xff pattern:$0x75316420]
      %385 = vrot.lane.b32.xlu0 %v383, 127
      %v386 = vpop.permute.xlu0 %385
      %387 = vrot.lane.b32.xlu0 %v384, 127
      %v388 = vpop.permute.xlu0 %387
      %vm389 = vcmask 1039360
      %v390 = vsel %vm389, %v386, %v388
      %v392 = vsel %vm354, %v345, 0
      %v394 = vsel %vm358, %v390, 0
      %396 = vmatpush.msra.mxu0 0.0
      %397 = vmatpush.msra.mxu0 0.0
      %398 = vmatpush.msra.mxu0 0.0
      %399 = vmatpush.msra.mxu0 0.0
      %400 = vmatpush.msra.mxu0 0.0
      %401 = vmatpush.msra.mxu0 0.0
      %402 = vmatpush.msra.mxu0 0.0
      %403 = vmatpush.msra.mxu0 0.0
      %404 = vmatpush.msra.mxu0 0.0
      %405 = vmatpush.msra.mxu0 0.0
      %406 = vmatpush.msra.mxu0 0.0
      %407 = vmatpush.msra.mxu0 0.0
      %408 = vmatpush.msra.mxu0 0.0
      %409 = vmatpush.msra.mxu0 0.0
      %410 = vmatpush.msra.mxu0 0.0
      %411 = vmatpush.msra.mxu0 %v394
      %412 = vmatmul.f32.gmra.mxu0 %v392
      %v413 = vpop.f32.mrf.mxu0
      %v414 = vadd.f32 0.0, %v413
      %415 = vdwg.mxu0
      %v417 = vsel %vm354, %v344, 0
      %419 = vmatpush.msra.mxu0 0.0
      %420 = vmatpush.msra.mxu0 0.0
      %421 = vmatpush.msra.mxu0 0.0
      %422 = vmatpush.msra.mxu0 0.0
      %423 = vmatpush.msra.mxu0 0.0
      %424 = vmatpush.msra.mxu0 0.0
      %425 = vmatpush.msra.mxu0 0.0
      %426 = vmatpush.msra.mxu0 0.0
      %427 = vmatpush.msra.mxu0 0.0
      %428 = vmatpush.msra.mxu0 0.0
      %429 = vmatpush.msra.mxu0 0.0
      %430 = vmatpush.msra.mxu0 0.0
      %431 = vmatpush.msra.mxu0 0.0
      %432 = vmatpush.msra.mxu0 0.0
      %433 = vmatpush.msra.mxu0 0.0
      %434 = vmatpush.msra.mxu0 %v360
      %435 = vmatmul.f32.gmra.mxu0 %v417
      %v436 = vpop.f32.mrf.mxu0
      %v437 = vadd.f32 %v414, %v436
      %438 = vdwg.mxu0
      %v439 = vadd.f32 %v437, %v352
      %440 = vadd.xlane.f32.xlu0 %v380
      %v441 = vpop.xlane.xlu0 %440
      %v442 = vrot.slane %v441, 4
      %v443 = vadd.f32 %v441, %v442
      %v444 = vrot.slane %v443, 2
      %v445 = vadd.f32 %v443, %v444
      %v446 = vrot.slane %v445, 1
      %v447 = vadd.f32 %v445, %v446
      %s448 = vtos %v447
      %449 = vadd.xlane.f32.xlu0 %v439
      %v450 = vpop.xlane.xlu0 %449
      %v451 = vrot.slane %v450, 4
      %v452 = vadd.f32 %v450, %v451
      %v453 = vrot.slane %v452, 2
      %v454 = vadd.f32 %v452, %v453
      %v455 = vrot.slane %v454, 1
      %v456 = vadd.f32 %v454, %v455
      %s457 = vtos %v456
      %s458 = sadd.f32 %s448, %s457
      %s459 = smul.f32 %s458, 0.00048828125
      %v460 = vstv %s459
      %v461 = vsub.f32 %v380, %v460
      %v462 = vmul.f32 %v461, %v461
      %463 = vadd.xlane.f32.xlu0 %v462
      %v464 = vpop.xlane.xlu0 %463
      %v465 = vrot.slane %v464, 4
      %v466 = vadd.f32 %v464, %v465
      %v467 = vrot.slane %v466, 2
      %v468 = vadd.f32 %v466, %v467
      %v469 = vrot.slane %v468, 1
      %v470 = vadd.f32 %v468, %v469
      %s471 = vtos %v470
      %v472 = vsub.f32 %v439, %v460
      %v473 = vmul.f32 %v472, %v472
      %474 = vadd.xlane.f32.xlu0 %v473
      %v475 = vpop.xlane.xlu0 %474
      %v476 = vrot.slane %v475, 4
      %v477 = vadd.f32 %v475, %v476
      %v478 = vrot.slane %v477, 2
      %v479 = vadd.f32 %v477, %v478
      %v480 = vrot.slane %v479, 1
      %v481 = vadd.f32 %v479, %v480
      %s482 = vtos %v481
      %s483 = sadd.f32 %s471, %s482
      %s484 = smul.f32 %s483, 0.00048828125
      %s485 = smax.f32 %s484, 0.0
      %s486 = sadd.f32 %s485, 1e-05
      %v487 = vstv %s486
      %v488 = vrsqrt.pop %v487
      %v489 = vmul.f32 %v488, %v487
      %v490 = vmul.f32 %v489, %v488
      %v491 = vmul.f32 0.5, %v490
      %v492 = vsub.f32 1.5, %v491
      %v493 = vmul.f32 %v488, %v492
      %vm494 = vweird.f32 %v487
      %vm495 = vweird.f32 %v488
      %vm496 = vmor %vm494, %vm495
      %v497 = vsel %vm496, %v488, %v493
      %s498 = vtos %v497
      %v499 = vstv %s498
      %v500 = vmul.f32 %v461, %v499
      %501 = vset.pattern.permute.xlu0 1
      %502 = vperm.xlu0 %501, %v347
      %v503 = vpop.permute.xlu0 %502
      %v505 = vmul.f32 %v500, %v503
      %506 = vset.pattern.permute.xlu0 2
      %507 = vperm.xlu0 %506, %v347
      %v508 = vpop.permute.xlu0 %507
      %v510 = vadd.f32 %v505, %v508
      %v511 = vmul.f32 %v510, 0.5
      %v512 = vmul.f32 %v510, 0.70710677
      %v513 = vmul.f32 %v512, %v512
      %v514 = vmin.f32 16.0, %v513
      %v515 = vmul.f32 %v514, 2.1237322e-06
      %v516 = vadd.f32 %v515, 0.00028619796
      %v517 = vmul.f32 %v514, %v516
      %v518 = vadd.f32 %v517, 0.0036580483
      %v519 = vmul.f32 %v514, %v518
      %v520 = vadd.f32 %v519, 0.05243302
      %v521 = vmul.f32 %v514, %v520
      %v522 = vadd.f32 %v521, 0.18741608
      %v523 = vmul.f32 %v514, %v522
      %v524 = vadd.f32 %v523, 1.1283791
      %v525 = vmul.f32 %v512, %v524
      %v526 = vmul.f32 %v514, 3.8918573e-05
      %v527 = vadd.f32 %v526, 0.001143296
      %v528 = vmul.f32 %v514, %v527
      %v529 = vadd.f32 %v528, 0.014752088
      %v530 = vmul.f32 %v514, %v529
      %v531 = vadd.f32 %v530, 0.112945676
      %v532 = vmul.f32 %v514, %v531
      %v533 = vadd.f32 %v532, 0.4994258
      %v534 = vmul.f32 %v514, %v533
      %v535 = vadd.f32 %v534, 1.0
      %v536 = vrcp.pop %v535
      %v537 = vmul.f32 %v535, %v536
      %v538 = vsub.f32 1.0, %v537
      %v539 = vmul.f32 %v536, %v538
      %v540 = vadd.f32 %v536, %v539
      %vm541 = vweird.f32 %v535
      %vm542 = vweird.f32 %v536
      %vm543 = vmor %vm541, %vm542
      %v544 = vsel %vm543, %v536, %v540
      %v545 = vand.u32 2147483647, %v535
      %vm546 = vcmp.eq.f32.partialorder %v545, 8.507059e+37
      %v547 = vand.u32 %v535, 2147483648
      %v548 = vor.u32 1.1754944e-38, %v547
      %v549 = vsel %vm546, %v548, %v544
      %v550 = vmul.f32 %v525, %v549
      %v551 = vmin.f32 %v550, 1.0
      %v552 = vmax.f32 %v551, -1.0
      %v553 = vadd.f32 %v552, 1.0
      %v554 = vmul.f32 %v511, %v553
      %v555 = vmul.f32 %v472, %v499
      %v556 = vmul.f32 %v555, %v503
      %v557 = vadd.f32 %v556, %v508
      %v558 = vmul.f32 %v557, 0.5
      %v559 = vmul.f32 %v557, 0.70710677
      %v560 = vmul.f32 %v559, %v559
      %v561 = vmin.f32 16.0, %v560
      %v562 = vmul.f32 %v561, 2.1237322e-06
      %v563 = vadd.f32 %v562, 0.00028619796
      %v564 = vmul.f32 %v561, %v563
      %v565 = vadd.f32 %v564, 0.0036580483
      %v566 = vmul.f32 %v561, %v565
      %v567 = vadd.f32 %v566, 0.05243302
      %v568 = vmul.f32 %v561, %v567
      %v569 = vadd.f32 %v568, 0.18741608
      %v570 = vmul.f32 %v561, %v569
      %v571 = vadd.f32 %v570, 1.1283791
      %v572 = vmul.f32 %v559, %v571
      %v573 = vmul.f32 %v561, 3.8918573e-05
      %v574 = vadd.f32 %v573, 0.001143296
      %v575 = vmul.f32 %v561, %v574
      %v576 = vadd.f32 %v575, 0.014752088
      %v577 = vmul.f32 %v561, %v576
      %v578 = vadd.f32 %v577, 0.112945676
      %v579 = vmul.f32 %v561, %v578
      %v580 = vadd.f32 %v579, 0.4994258
      %v581 = vmul.f32 %v561, %v580
      %v582 = vadd.f32 %v581, 1.0
      %v583 = vrcp.pop %v582
      %v584 = vmul.f32 %v582, %v583
      %v585 = vsub.f32 1.0, %v584
      %v586 = vmul.f32 %v583, %v585
      %v587 = vadd.f32 %v583, %v586
      %vm588 = vweird.f32 %v582
      %vm589 = vweird.f32 %v583
      %vm590 = vmor %vm588, %vm589
      %v591 = vsel %vm590, %v583, %v587
      %v592 = vand.u32 2147483647, %v582
      %vm593 = vcmp.eq.f32.partialorder %v592, 8.507059e+37
      %v594 = vand.u32 %v582, 2147483648
      %v595 = vor.u32 1.1754944e-38, %v594
      %v596 = vsel %vm593, %v595, %v591
      %v597 = vmul.f32 %v572, %v596
      %v598 = vmin.f32 %v597, 1.0
      %v599 = vmax.f32 %v598, -1.0
      %v600 = vadd.f32 %v599, 1.0
      %v601 = vmul.f32 %v558, %v600
      %v602 = vld [vmem:[%s323] sm:$0xf]
      %v603 = vld [vmem:[%s329] sm:$0xf]
      %605 = vrot.lane.b32.xlu0 %v346, 120
      %v606 = vpop.permute.xlu0 %605
      %v607 = vsel %vm354, %v606, 0
      %v610 = vsel %vm358, %v602, 0
      %612 = vmatpush.msra.mxu0 0.0
      %613 = vmatpush.msra.mxu0 0.0
      %614 = vmatpush.msra.mxu0 0.0
      %615 = vmatpush.msra.mxu0 0.0
      %616 = vmatpush.msra.mxu0 0.0
      %617 = vmatpush.msra.mxu0 0.0
      %618 = vmatpush.msra.mxu0 0.0
      %619 = vmatpush.msra.mxu0 0.0
      %620 = vmatpush.msra.mxu0 0.0
      %621 = vmatpush.msra.mxu0 0.0
      %622 = vmatpush.msra.mxu0 0.0
      %623 = vmatpush.msra.mxu0 0.0
      %624 = vmatpush.msra.mxu0 0.0
      %625 = vmatpush.msra.mxu0 0.0
      %626 = vmatpush.msra.mxu0 0.0
      %627 = vmatpush.msra.mxu0 %v610
      %628 = vmatmul.f32.gmra.mxu0 %v607
      %v629 = vpop.f32.mrf.mxu0
      %v630 = vadd.f32 0.0, %v629
      %631 = vdwg.mxu0
      %vm632 = vcmask 64512
      %v633 = vsel %vm632, %v346, 0
      %635 = vmatpush.msra.mxu0 0.0
      %636 = vmatpush.msra.mxu0 0.0
      %637 = vmatpush.msra.mxu0 0.0
      %638 = vmatpush.msra.mxu0 0.0
      %639 = vmatpush.msra.mxu0 0.0
      %640 = vmatpush.msra.mxu0 0.0
      %641 = vmatpush.msra.mxu0 0.0
      %642 = vmatpush.msra.mxu0 0.0
      %643 = vmatpush.msra.mxu0 0.0
      %644 = vmatpush.msra.mxu0 0.0
      %645 = vmatpush.msra.mxu0 0.0
      %646 = vmatpush.msra.mxu0 0.0
      %647 = vmatpush.msra.mxu0 0.0
      %648 = vmatpush.msra.mxu0 0.0
      %649 = vmatpush.msra.mxu0 0.0
      %650 = vmatpush.msra.mxu0 %v554
      %651 = vmatmul.f32.gmra.mxu0 %v633
      %v652 = vpop.f32.mrf.mxu0
      %v653 = vadd.f32 %v630, %v652
      %654 = vdwg.mxu0
      %655 = vset.pattern.permute.xlu0 3
      %656 = vperm.xlu0 %655, %v347
      %v657 = vpop.permute.xlu0 %656
      %v659 = vadd.f32 %v653, %v657
      %v661 = vsel %vm358, %v603, 0
      %663 = vmatpush.msra.mxu0 0.0
      %664 = vmatpush.msra.mxu0 0.0
      %665 = vmatpush.msra.mxu0 0.0
      %666 = vmatpush.msra.mxu0 0.0
      %667 = vmatpush.msra.mxu0 0.0
      %668 = vmatpush.msra.mxu0 0.0
      %669 = vmatpush.msra.mxu0 0.0
      %670 = vmatpush.msra.mxu0 0.0
      %671 = vmatpush.msra.mxu0 0.0
      %672 = vmatpush.msra.mxu0 0.0
      %673 = vmatpush.msra.mxu0 0.0
      %674 = vmatpush.msra.mxu0 0.0
      %675 = vmatpush.msra.mxu0 0.0
      %676 = vmatpush.msra.mxu0 0.0
      %677 = vmatpush.msra.mxu0 0.0
      %678 = vmatpush.msra.mxu0 %v661
      %679 = vmatmul.f32.gmra.mxu0 %v607
      %v680 = vpop.f32.mrf.mxu0
      %v681 = vadd.f32 0.0, %v680
      %682 = vdwg.mxu0
      %683 = vmatpush.msra.mxu0 0.0
      %684 = vmatpush.msra.mxu0 0.0
      %685 = vmatpush.msra.mxu0 0.0
      %686 = vmatpush.msra.mxu0 0.0
      %687 = vmatpush.msra.mxu0 0.0
      %688 = vmatpush.msra.mxu0 0.0
      %689 = vmatpush.msra.mxu0 0.0
      %690 = vmatpush.msra.mxu0 0.0
      %691 = vmatpush.msra.mxu0 0.0
      %692 = vmatpush.msra.mxu0 0.0
      %693 = vmatpush.msra.mxu0 0.0
      %694 = vmatpush.msra.mxu0 0.0
      %695 = vmatpush.msra.mxu0 0.0
      %696 = vmatpush.msra.mxu0 0.0
      %697 = vmatpush.msra.mxu0 0.0
      %698 = vmatpush.msra.mxu0 %v601
      %699 = vmatmul.f32.gmra.mxu0 %v633
      %v700 = vpop.f32.mrf.mxu0
      %v701 = vadd.f32 %v681, %v700
      %702 = vdwg.mxu0
      %v703 = vadd.f32 %v701, %v657
      %704 = vadd.xlane.f32.xlu0 %v659
      %v705 = vpop.xlane.xlu0 %704
      %v706 = vrot.slane %v705, 4
      %v707 = vadd.f32 %v705, %v706
      %v708 = vrot.slane %v707, 2
      %v709 = vadd.f32 %v707, %v708
      %v710 = vrot.slane %v709, 1
      %v711 = vadd.f32 %v709, %v710
      %s712 = vtos %v711
      %713 = vadd.xlane.f32.xlu0 %v703
      %v714 = vpop.xlane.xlu0 %713
      %v715 = vrot.slane %v714, 4
      %v716 = vadd.f32 %v714, %v715
      %v717 = vrot.slane %v716, 2
      %v718 = vadd.f32 %v716, %v717
      %v719 = vrot.slane %v718, 1
      %v720 = vadd.f32 %v718, %v719
      %s721 = vtos %v720
      %s722 = sadd.f32 %s712, %s721
      %s723 = smul.f32 %s722, 0.00048828125
      %v724 = vstv %s723
      %v725 = vsub.f32 %v659, %v724
      %v726 = vmul.f32 %v725, %v725
      %727 = vadd.xlane.f32.xlu0 %v726
      %v728 = vpop.xlane.xlu0 %727
      %v729 = vrot.slane %v728, 4
      %v730 = vadd.f32 %v728, %v729
      %v731 = vrot.slane %v730, 2
      %v732 = vadd.f32 %v730, %v731
      %v733 = vrot.slane %v732, 1
      %v734 = vadd.f32 %v732, %v733
      %s735 = vtos %v734
      %v736 = vsub.f32 %v703, %v724
      %v737 = vmul.f32 %v736, %v736
      %738 = vadd.xlane.f32.xlu0 %v737
      %v739 = vpop.xlane.xlu0 %738
      %v740 = vrot.slane %v739, 4
      %v741 = vadd.f32 %v739, %v740
      %v742 = vrot.slane %v741, 2
      %v743 = vadd.f32 %v741, %v742
      %v744 = vrot.slane %v743, 1
      %v745 = vadd.f32 %v743, %v744
      %s746 = vtos %v745
      %s747 = sadd.f32 %s735, %s746
      %s748 = smul.f32 %s747, 0.00048828125
      %s749 = smax.f32 %s748, 0.0
      %s750 = sadd.f32 %s749, 1e-05
      %v751 = vstv %s750
      %v752 = vrsqrt.pop %v751
      %v753 = vmul.f32 %v752, %v751
      %v754 = vmul.f32 %v753, %v752
      %v755 = vmul.f32 0.5, %v754
      %v756 = vsub.f32 1.5, %v755
      %v757 = vmul.f32 %v752, %v756
      %vm758 = vweird.f32 %v751
      %vm759 = vweird.f32 %v752
      %vm760 = vmor %vm758, %vm759
      %v761 = vsel %vm760, %v752, %v757
      %s762 = vtos %v761
      %v763 = vstv %s762
      %v764 = vmul.f32 %v725, %v763
      %765 = vset.pattern.permute.xlu0 4
      %766 = vperm.xlu0 %765, %v347
      %v767 = vpop.permute.xlu0 %766
      %v769 = vmul.f32 %v764, %v767
      %770 = vset.pattern.permute.xlu0 5
      %771 = vperm.xlu0 %770, %v347
      %v772 = vpop.permute.xlu0 %771
      %v774 = vadd.f32 %v769, %v772
      %v775 = vmul.f32 %v774, 0.5
      %v776 = vmul.f32 %v774, 0.70710677
      %v777 = vmul.f32 %v776, %v776
      %v778 = vmin.f32 16.0, %v777
      %v779 = vmul.f32 %v778, 2.1237322e-06
      %v780 = vadd.f32 %v779, 0.00028619796
      %v781 = vmul.f32 %v778, %v780
      %v782 = vadd.f32 %v781, 0.0036580483
      %v783 = vmul.f32 %v778, %v782
      %v784 = vadd.f32 %v783, 0.05243302
      %v785 = vmul.f32 %v778, %v784
      %v786 = vadd.f32 %v785, 0.18741608
      %v787 = vmul.f32 %v778, %v786
      %v788 = vadd.f32 %v787, 1.1283791
      %v789 = vmul.f32 %v776, %v788
      %v790 = vmul.f32 %v778, 3.8918573e-05
      %v791 = vadd.f32 %v790, 0.001143296
      %v792 = vmul.f32 %v778, %v791
      %v793 = vadd.f32 %v792, 0.014752088
      %v794 = vmul.f32 %v778, %v793
      %v795 = vadd.f32 %v794, 0.112945676
      %v796 = vmul.f32 %v778, %v795
      %v797 = vadd.f32 %v796, 0.4994258
      %v798 = vmul.f32 %v778, %v797
      %v799 = vadd.f32 %v798, 1.0
      %v800 = vrcp.pop %v799
      %v801 = vmul.f32 %v799, %v800
      %v802 = vsub.f32 1.0, %v801
      %v803 = vmul.f32 %v800, %v802
      %v804 = vadd.f32 %v800, %v803
      %vm805 = vweird.f32 %v799
      %vm806 = vweird.f32 %v800
      %vm807 = vmor %vm805, %vm806
      %v808 = vsel %vm807, %v800, %v804
      %v809 = vand.u32 2147483647, %v799
      %vm810 = vcmp.eq.f32.partialorder %v809, 8.507059e+37
      %v811 = vand.u32 %v799, 2147483648
      %v812 = vor.u32 1.1754944e-38, %v811
      %v813 = vsel %vm810, %v812, %v808
      %v814 = vmul.f32 %v789, %v813
      %v815 = vmin.f32 %v814, 1.0
      %v816 = vmax.f32 %v815, -1.0
      %v817 = vadd.f32 %v816, 1.0
      %v818 = vmul.f32 %v775, %v817
      %819 = vst [vmem:[%s335] sm:$0xff] %v818
      %v820 = vmul.f32 %v736, %v763
      %v821 = vmul.f32 %v820, %v767
      %v822 = vadd.f32 %v821, %v772
      %v823 = vmul.f32 %v822, 0.5
      %v824 = vmul.f32 %v822, 0.70710677
      %v825 = vmul.f32 %v824, %v824
      %v826 = vmin.f32 16.0, %v825
      %v827 = vmul.f32 %v826, 2.1237322e-06
      %v828 = vadd.f32 %v827, 0.00028619796
      %v829 = vmul.f32 %v826, %v828
      %v830 = vadd.f32 %v829, 0.0036580483
      %v831 = vmul.f32 %v826, %v830
      %v832 = vadd.f32 %v831, 0.05243302
      %v833 = vmul.f32 %v826, %v832
      %v834 = vadd.f32 %v833, 0.18741608
      %v835 = vmul.f32 %v826, %v834
      %v836 = vadd.f32 %v835, 1.1283791
      %v837 = vmul.f32 %v824, %v836
      %v838 = vmul.f32 %v826, 3.8918573e-05
      %v839 = vadd.f32 %v838, 0.001143296
      %v840 = vmul.f32 %v826, %v839
      %v841 = vadd.f32 %v840, 0.014752088
      %v842 = vmul.f32 %v826, %v841
      %v843 = vadd.f32 %v842, 0.112945676
      %v844 = vmul.f32 %v826, %v843
      %v845 = vadd.f32 %v844, 0.4994258
      %v846 = vmul.f32 %v826, %v845
      %v847 = vadd.f32 %v846, 1.0
      %v848 = vrcp.pop %v847
      %v849 = vmul.f32 %v847, %v848
      %v850 = vsub.f32 1.0, %v849
      %v851 = vmul.f32 %v848, %v850
      %v852 = vadd.f32 %v848, %v851
      %vm853 = vweird.f32 %v847
      %vm854 = vweird.f32 %v848
      %vm855 = vmor %vm853, %vm854
      %v856 = vsel %vm855, %v848, %v852
      %v857 = vand.u32 2147483647, %v847
      %vm858 = vcmp.eq.f32.partialorder %v857, 8.507059e+37
      %v859 = vand.u32 %v847, 2147483648
      %v860 = vor.u32 1.1754944e-38, %v859
      %v861 = vsel %vm858, %v860, %v856
      %v862 = vmul.f32 %v837, %v861
      %v863 = vmin.f32 %v862, 1.0
      %v864 = vmax.f32 %v863, -1.0
      %v865 = vadd.f32 %v864, 1.0
      %v866 = vmul.f32 %v823, %v865
      %867 = vst [vmem:[%s341] sm:$0xff] %v866
      %s868 = scalar_lea.vmem %s317, 8
      %v869 = vld [vmem:[%s868] sm:$0xff]
      %v871 = vsel %vm358, %v869, 0
      %873 = vmatpush.msra.mxu0 0.0
      %874 = vmatpush.msra.mxu0 0.0
      %875 = vmatpush.msra.mxu0 0.0
      %876 = vmatpush.msra.mxu0 0.0
      %877 = vmatpush.msra.mxu0 0.0
      %878 = vmatpush.msra.mxu0 0.0
      %879 = vmatpush.msra.mxu0 0.0
      %880 = vmatpush.msra.mxu0 0.0
      %881 = vmatpush.msra.mxu0 0.0
      %882 = vmatpush.msra.mxu0 0.0
      %883 = vmatpush.msra.mxu0 0.0
      %884 = vmatpush.msra.mxu0 0.0
      %885 = vmatpush.msra.mxu0 0.0
      %886 = vmatpush.msra.mxu0 0.0
      %887 = vmatpush.msra.mxu0 0.0
      %888 = vmatpush.msra.mxu0 %v871
      %889 = vmatmul.f32.gmra.mxu0 %v356
      %v890 = vpop.f32.mrf.mxu0
      %v891 = vadd.f32 %v352, %v890
      %892 = vdwg.mxu0
      %893 = vst [vmem:[#allocation1] ss:$2 sm:$0xff] %v869
      %v894 = vld.sshfl [vmem:[#allocation1] sm:$0xff pattern:$0x75316420]
      %v895 = vld.sshfl [vmem:[#allocation1 + $0x8] sm:$0xff pattern:$0x75316420]
      %896 = vrot.lane.b32.xlu0 %v894, 127
      %v897 = vpop.permute.xlu0 %896
      %898 = vrot.lane.b32.xlu0 %v895, 127
      %v899 = vpop.permute.xlu0 %898
      %v900 = vsel %vm389, %v897, %v899
      %v901 = vsel %vm358, %v900, 0
      %903 = vmatpush.msra.mxu0 0.0
      %904 = vmatpush.msra.mxu0 0.0
      %905 = vmatpush.msra.mxu0 0.0
      %906 = vmatpush.msra.mxu0 0.0
      %907 = vmatpush.msra.mxu0 0.0
      %908 = vmatpush.msra.mxu0 0.0
      %909 = vmatpush.msra.mxu0 0.0
      %910 = vmatpush.msra.mxu0 0.0
      %911 = vmatpush.msra.mxu0 0.0
      %912 = vmatpush.msra.mxu0 0.0
      %913 = vmatpush.msra.mxu0 0.0
      %914 = vmatpush.msra.mxu0 0.0
      %915 = vmatpush.msra.mxu0 0.0
      %916 = vmatpush.msra.mxu0 0.0
      %917 = vmatpush.msra.mxu0 0.0
      %918 = vmatpush.msra.mxu0 %v901
      %919 = vmatmul.f32.gmra.mxu0 %v392
      %v920 = vpop.f32.mrf.mxu0
      %v921 = vadd.f32 0.0, %v920
      %922 = vdwg.mxu0
      %923 = vmatpush.msra.mxu0 0.0
      %924 = vmatpush.msra.mxu0 0.0
      %925 = vmatpush.msra.mxu0 0.0
      %926 = vmatpush.msra.mxu0 0.0
      %927 = vmatpush.msra.mxu0 0.0
      %928 = vmatpush.msra.mxu0 0.0
      %929 = vmatpush.msra.mxu0 0.0
      %930 = vmatpush.msra.mxu0 0.0
      %931 = vmatpush.msra.mxu0 0.0
      %932 = vmatpush.msra.mxu0 0.0
      %933 = vmatpush.msra.mxu0 0.0
      %934 = vmatpush.msra.mxu0 0.0
      %935 = vmatpush.msra.mxu0 0.0
      %936 = vmatpush.msra.mxu0 0.0
      %937 = vmatpush.msra.mxu0 0.0
      %938 = vmatpush.msra.mxu0 %v871
      %939 = vmatmul.f32.gmra.mxu0 %v417
      %v940 = vpop.f32.mrf.mxu0
      %v941 = vadd.f32 %v921, %v940
      %942 = vdwg.mxu0
      %v943 = vadd.f32 %v941, %v352
      %944 = vadd.xlane.f32.xlu0 %v891
      %v945 = vpop.xlane.xlu0 %944
      %v946 = vrot.slane %v945, 4
      %v947 = vadd.f32 %v945, %v946
      %v948 = vrot.slane %v947, 2
      %v949 = vadd.f32 %v947, %v948
      %v950 = vrot.slane %v949, 1
      %v951 = vadd.f32 %v949, %v950
      %s952 = vtos %v951
      %953 = vadd.xlane.f32.xlu0 %v943
      %v954 = vpop.xlane.xlu0 %953
      %v955 = vrot.slane %v954, 4
      %v956 = vadd.f32 %v954, %v955
      %v957 = vrot.slane %v956, 2
      %v958 = vadd.f32 %v956, %v957
      %v959 = vrot.slane %v958, 1
      %v960 = vadd.f32 %v958, %v959
      %s961 = vtos %v960
      %s962 = sadd.f32 %s952, %s961
      %s963 = smul.f32 %s962, 0.00048828125
      %v964 = vstv %s963
      %v965 = vsub.f32 %v891, %v964
      %v966 = vmul.f32 %v965, %v965
      %967 = vadd.xlane.f32.xlu0 %v966
      %v968 = vpop.xlane.xlu0 %967
      %v969 = vrot.slane %v968, 4
      %v970 = vadd.f32 %v968, %v969
      %v971 = vrot.slane %v970, 2
      %v972 = vadd.f32 %v970, %v971
      %v973 = vrot.slane %v972, 1
      %v974 = vadd.f32 %v972, %v973
      %s975 = vtos %v974
      %v976 = vsub.f32 %v943, %v964
      %v977 = vmul.f32 %v976, %v976
      %978 = vadd.xlane.f32.xlu0 %v977
      %v979 = vpop.xlane.xlu0 %978
      %v980 = vrot.slane %v979, 4
      %v981 = vadd.f32 %v979, %v980
      %v982 = vrot.slane %v981, 2
      %v983 = vadd.f32 %v981, %v982
      %v984 = vrot.slane %v983, 1
      %v985 = vadd.f32 %v983, %v984
      %s986 = vtos %v985
      %s987 = sadd.f32 %s975, %s986
      %s988 = smul.f32 %s987, 0.00048828125
      %s989 = smax.f32 %s988, 0.0
      %s990 = sadd.f32 %s989, 1e-05
      %v991 = vstv %s990
      %v992 = vrsqrt.pop %v991
      %v993 = vmul.f32 %v992, %v991
      %v994 = vmul.f32 %v993, %v992
      %v995 = vmul.f32 0.5, %v994
      %v996 = vsub.f32 1.5, %v995
      %v997 = vmul.f32 %v992, %v996
      %vm998 = vweird.f32 %v991
      %vm999 = vweird.f32 %v992
      %vm1000 = vmor %vm998, %vm999
      %v1001 = vsel %vm1000, %v992, %v997
      %s1002 = vtos %v1001
      %v1003 = vstv %s1002
      %v1004 = vmul.f32 %v965, %v1003
      %v1005 = vmul.f32 %v1004, %v503
      %v1006 = vadd.f32 %v1005, %v508
      %v1007 = vmul.f32 %v1006, 0.5
      %v1008 = vmul.f32 %v1006, 0.70710677
      %v1009 = vmul.f32 %v1008, %v1008
      %v1010 = vmin.f32 16.0, %v1009
      %v1011 = vmul.f32 %v1010, 2.1237322e-06
      %v1012 = vadd.f32 %v1011, 0.00028619796
      %v1013 = vmul.f32 %v1010, %v1012
      %v1014 = vadd.f32 %v1013, 0.0036580483
      %v1015 = vmul.f32 %v1010, %v1014
      %v1016 = vadd.f32 %v1015, 0.05243302
      %v1017 = vmul.f32 %v1010, %v1016
      %v1018 = vadd.f32 %v1017, 0.18741608
      %v1019 = vmul.f32 %v1010, %v1018
      %v1020 = vadd.f32 %v1019, 1.1283791
      %v1021 = vmul.f32 %v1008, %v1020
      %v1022 = vmul.f32 %v1010, 3.8918573e-05
      %v1023 = vadd.f32 %v1022, 0.001143296
      %v1024 = vmul.f32 %v1010, %v1023
      %v1025 = vadd.f32 %v1024, 0.014752088
      %v1026 = vmul.f32 %v1010, %v1025
      %v1027 = vadd.f32 %v1026, 0.112945676
      %v1028 = vmul.f32 %v1010, %v1027
      %v1029 = vadd.f32 %v1028, 0.4994258
      %v1030 = vmul.f32 %v1010, %v1029
      %v1031 = vadd.f32 %v1030, 1.0
      %v1032 = vrcp.pop %v1031
      %v1033 = vmul.f32 %v1031, %v1032
      %v1034 = vsub.f32 1.0, %v1033
      %v1035 = vmul.f32 %v1032, %v1034
      %v1036 = vadd.f32 %v1032, %v1035
      %vm1037 = vweird.f32 %v1031
      %vm1038 = vweird.f32 %v1032
      %vm1039 = vmor %vm1037, %vm1038
      %v1040 = vsel %vm1039, %v1032, %v1036
      %v1041 = vand.u32 2147483647, %v1031
      %vm1042 = vcmp.eq.f32.partialorder %v1041, 8.507059e+37
      %v1043 = vand.u32 %v1031, 2147483648
      %v1044 = vor.u32 1.1754944e-38, %v1043
      %v1045 = vsel %vm1042, %v1044, %v1040
      %v1046 = vmul.f32 %v1021, %v1045
      %v1047 = vmin.f32 %v1046, 1.0
      %v1048 = vmax.f32 %v1047, -1.0
      %v1049 = vadd.f32 %v1048, 1.0
      %v1050 = vmul.f32 %v1007, %v1049
      %v1051 = vmul.f32 %v976, %v1003
      %v1052 = vmul.f32 %v1051, %v503
      %v1053 = vadd.f32 %v1052, %v508
      %v1054 = vmul.f32 %v1053, 0.5
      %v1055 = vmul.f32 %v1053, 0.70710677
      %v1056 = vmul.f32 %v1055, %v1055
      %v1057 = vmin.f32 16.0, %v1056
      %v1058 = vmul.f32 %v1057, 2.1237322e-06
      %v1059 = vadd.f32 %v1058, 0.00028619796
      %v1060 = vmul.f32 %v1057, %v1059
      %v1061 = vadd.f32 %v1060, 0.0036580483
      %v1062 = vmul.f32 %v1057, %v1061
      %v1063 = vadd.f32 %v1062, 0.05243302
      %v1064 = vmul.f32 %v1057, %v1063
      %v1065 = vadd.f32 %v1064, 0.18741608
      %v1066 = vmul.f32 %v1057, %v1065
      %v1067 = vadd.f32 %v1066, 1.1283791
      %v1068 = vmul.f32 %v1055, %v1067
      %v1069 = vmul.f32 %v1057, 3.8918573e-05
      %v1070 = vadd.f32 %v1069, 0.001143296
      %v1071 = vmul.f32 %v1057, %v1070
      %v1072 = vadd.f32 %v1071, 0.014752088
      %v1073 = vmul.f32 %v1057, %v1072
      %v1074 = vadd.f32 %v1073, 0.112945676
      %v1075 = vmul.f32 %v1057, %v1074
      %v1076 = vadd.f32 %v1075, 0.4994258
      %v1077 = vmul.f32 %v1057, %v1076
      %v1078 = vadd.f32 %v1077, 1.0
      %v1079 = vrcp.pop %v1078
      %v1080 = vmul.f32 %v1078, %v1079
      %v1081 = vsub.f32 1.0, %v1080
      %v1082 = vmul.f32 %v1079, %v1081
      %v1083 = vadd.f32 %v1079, %v1082
      %vm1084 = vweird.f32 %v1078
      %vm1085 = vweird.f32 %v1079
      %vm1086 = vmor %vm1084, %vm1085
      %v1087 = vsel %vm1086, %v1079, %v1083
      %v1088 = vand.u32 2147483647, %v1078
      %vm1089 = vcmp.eq.f32.partialorder %v1088, 8.507059e+37
      %v1090 = vand.u32 %v1078, 2147483648
      %v1091 = vor.u32 1.1754944e-38, %v1090
      %v1092 = vsel %vm1089, %v1091, %v1087
      %v1093 = vmul.f32 %v1068, %v1092
      %v1094 = vmin.f32 %v1093, 1.0
      %v1095 = vmax.f32 %v1094, -1.0
      %v1096 = vadd.f32 %v1095, 1.0
      %v1097 = vmul.f32 %v1054, %v1096
      %s1098 = scalar_lea.vmem %s323, 4
      %v1099 = vld [vmem:[%s1098] sm:$0xf]
      %s1100 = scalar_lea.vmem %s329, 4
      %v1101 = vld [vmem:[%s1100] sm:$0xf]
      %v1103 = vsel %vm358, %v1099, 0
      %1105 = vmatpush.msra.mxu0 0.0
      %1106 = vmatpush.msra.mxu0 0.0
      %1107 = vmatpush.msra.mxu0 0.0
      %1108 = vmatpush.msra.mxu0 0.0
      %1109 = vmatpush.msra.mxu0 0.0
      %1110 = vmatpush.msra.mxu0 0.0
      %1111 = vmatpush.msra.mxu0 0.0
      %1112 = vmatpush.msra.mxu0 0.0
      %1113 = vmatpush.msra.mxu0 0.0
      %1114 = vmatpush.msra.mxu0 0.0
      %1115 = vmatpush.msra.mxu0 0.0
      %1116 = vmatpush.msra.mxu0 0.0
      %1117 = vmatpush.msra.mxu0 0.0
      %1118 = vmatpush.msra.mxu0 0.0
      %1119 = vmatpush.msra.mxu0 0.0
      %1120 = vmatpush.msra.mxu0 %v1103
      %1121 = vmatmul.f32.gmra.mxu0 %v607
      %v1122 = vpop.f32.mrf.mxu0
      %v1123 = vadd.f32 0.0, %v1122
      %1124 = vdwg.mxu0
      %1125 = vmatpush.msra.mxu0 0.0
      %1126 = vmatpush.msra.mxu0 0.0
      %1127 = vmatpush.msra.mxu0 0.0
      %1128 = vmatpush.msra.mxu0 0.0
      %1129 = vmatpush.msra.mxu0 0.0
      %1130 = vmatpush.msra.mxu0 0.0
      %1131 = vmatpush.msra.mxu0 0.0
      %1132 = vmatpush.msra.mxu0 0.0
      %1133 = vmatpush.msra.mxu0 0.0
      %1134 = vmatpush.msra.mxu0 0.0
      %1135 = vmatpush.msra.mxu0 0.0
      %1136 = vmatpush.msra.mxu0 0.0
      %1137 = vmatpush.msra.mxu0 0.0
      %1138 = vmatpush.msra.mxu0 0.0
      %1139 = vmatpush.msra.mxu0 0.0
      %1140 = vmatpush.msra.mxu0 %v1050
      %1141 = vmatmul.f32.gmra.mxu0 %v633
      %v1142 = vpop.f32.mrf.mxu0
      %v1143 = vadd.f32 %v1123, %v1142
      %1144 = vdwg.mxu0
      %v1145 = vadd.f32 %v1143, %v657
      %v1147 = vsel %vm358, %v1101, 0
      %1149 = vmatpush.msra.mxu0 0.0
      %1150 = vmatpush.msra.mxu0 0.0
      %1151 = vmatpush.msra.mxu0 0.0
      %1152 = vmatpush.msra.mxu0 0.0
      %1153 = vmatpush.msra.mxu0 0.0
      %1154 = vmatpush.msra.mxu0 0.0
      %1155 = vmatpush.msra.mxu0 0.0
      %1156 = vmatpush.msra.mxu0 0.0
      %1157 = vmatpush.msra.mxu0 0.0
      %1158 = vmatpush.msra.mxu0 0.0
      %1159 = vmatpush.msra.mxu0 0.0
      %1160 = vmatpush.msra.mxu0 0.0
      %1161 = vmatpush.msra.mxu0 0.0
      %1162 = vmatpush.msra.mxu0 0.0
      %1163 = vmatpush.msra.mxu0 0.0
      %1164 = vmatpush.msra.mxu0 %v1147
      %1165 = vmatmul.f32.gmra.mxu0 %v607
      %v1166 = vpop.f32.mrf.mxu0
      %v1167 = vadd.f32 0.0, %v1166
      %1168 = vdwg.mxu0
      %1169 = vmatpush.msra.mxu0 0.0
      %1170 = vmatpush.msra.mxu0 0.0
      %1171 = vmatpush.msra.mxu0 0.0
      %1172 = vmatpush.msra.mxu0 0.0
      %1173 = vmatpush.msra.mxu0 0.0
      %1174 = vmatpush.msra.mxu0 0.0
      %1175 = vmatpush.msra.mxu0 0.0
      %1176 = vmatpush.msra.mxu0 0.0
      %1177 = vmatpush.msra.mxu0 0.0
      %1178 = vmatpush.msra.mxu0 0.0
      %1179 = vmatpush.msra.mxu0 0.0
      %1180 = vmatpush.msra.mxu0 0.0
      %1181 = vmatpush.msra.mxu0 0.0
      %1182 = vmatpush.msra.mxu0 0.0
      %1183 = vmatpush.msra.mxu0 0.0
      %1184 = vmatpush.msra.mxu0 %v1097
      %1185 = vmatmul.f32.gmra.mxu0 %v633
      %v1186 = vpop.f32.mrf.mxu0
      %v1187 = vadd.f32 %v1167, %v1186
      %1188 = vdwg.mxu0
      %v1189 = vadd.f32 %v1187, %v657
      %1190 = vadd.xlane.f32.xlu0 %v1145
      %v1191 = vpop.xlane.xlu0 %1190
      %v1192 = vrot.slane %v1191, 4
      %v1193 = vadd.f32 %v1191, %v1192
      %v1194 = vrot.slane %v1193, 2
      %v1195 = vadd.f32 %v1193, %v1194
      %v1196 = vrot.slane %v1195, 1
      %v1197 = vadd.f32 %v1195, %v1196
      %s1198 = vtos %v1197
      %1199 = vadd.xlane.f32.xlu0 %v1189
      %v1200 = vpop.xlane.xlu0 %1199
      %v1201 = vrot.slane %v1200, 4
      %v1202 = vadd.f32 %v1200, %v1201
      %v1203 = vrot.slane %v1202, 2
      %v1204 = vadd.f32 %v1202, %v1203
      %v1205 = vrot.slane %v1204, 1
      %v1206 = vadd.f32 %v1204, %v1205
      %s1207 = vtos %v1206
      %s1208 = sadd.f32 %s1198, %s1207
      %s1209 = smul.f32 %s1208, 0.00048828125
      %v1210 = vstv %s1209
      %v1211 = vsub.f32 %v1145, %v1210
      %v1212 = vmul.f32 %v1211, %v1211
      %1213 = vadd.xlane.f32.xlu0 %v1212
      %v1214 = vpop.xlane.xlu0 %1213
      %v1215 = vrot.slane %v1214, 4
      %v1216 = vadd.f32 %v1214, %v1215
      %v1217 = vrot.slane %v1216, 2
      %v1218 = vadd.f32 %v1216, %v1217
      %v1219 = vrot.slane %v1218, 1
      %v1220 = vadd.f32 %v1218, %v1219
      %s1221 = vtos %v1220
      %v1222 = vsub.f32 %v1189, %v1210
      %v1223 = vmul.f32 %v1222, %v1222
      %1224 = vadd.xlane.f32.xlu0 %v1223
      %v1225 = vpop.xlane.xlu0 %1224
      %v1226 = vrot.slane %v1225, 4
      %v1227 = vadd.f32 %v1225, %v1226
      %v1228 = vrot.slane %v1227, 2
      %v1229 = vadd.f32 %v1227, %v1228
      %v1230 = vrot.slane %v1229, 1
      %v1231 = vadd.f32 %v1229, %v1230
      %s1232 = vtos %v1231
      %s1233 = sadd.f32 %s1221, %s1232
      %s1234 = smul.f32 %s1233, 0.00048828125
      %s1235 = smax.f32 %s1234, 0.0
      %s1236 = sadd.f32 %s1235, 1e-05
      %v1237 = vstv %s1236
      %v1238 = vrsqrt.pop %v1237
      %v1239 = vmul.f32 %v1238, %v1237
      %v1240 = vmul.f32 %v1239, %v1238
      %v1241 = vmul.f32 0.5, %v1240
      %v1242 = vsub.f32 1.5, %v1241
      %v1243 = vmul.f32 %v1238, %v1242
      %vm1244 = vweird.f32 %v1237
      %vm1245 = vweird.f32 %v1238
      %vm1246 = vmor %vm1244, %vm1245
      %v1247 = vsel %vm1246, %v1238, %v1243
      %s1248 = vtos %v1247
      %v1249 = vstv %s1248
      %v1250 = vmul.f32 %v1211, %v1249
      %v1251 = vmul.f32 %v1250, %v767
      %v1252 = vadd.f32 %v1251, %v772
      %v1253 = vmul.f32 %v1252, 0.5
      %v1254 = vmul.f32 %v1252, 0.70710677
      %v1255 = vmul.f32 %v1254, %v1254
      %v1256 = vmin.f32 16.0, %v1255
      %v1257 = vmul.f32 %v1256, 2.1237322e-06
      %v1258 = vadd.f32 %v1257, 0.00028619796
      %v1259 = vmul.f32 %v1256, %v1258
      %v1260 = vadd.f32 %v1259, 0.0036580483
      %v1261 = vmul.f32 %v1256, %v1260
      %v1262 = vadd.f32 %v1261, 0.05243302
      %v1263 = vmul.f32 %v1256, %v1262
      %v1264 = vadd.f32 %v1263, 0.18741608
      %v1265 = vmul.f32 %v1256, %v1264
      %v1266 = vadd.f32 %v1265, 1.1283791
      %v1267 = vmul.f32 %v1254, %v1266
      %v1268 = vmul.f32 %v1256, 3.8918573e-05
      %v1269 = vadd.f32 %v1268, 0.001143296
      %v1270 = vmul.f32 %v1256, %v1269
      %v1271 = vadd.f32 %v1270, 0.014752088
      %v1272 = vmul.f32 %v1256, %v1271
      %v1273 = vadd.f32 %v1272, 0.112945676
      %v1274 = vmul.f32 %v1256, %v1273
      %v1275 = vadd.f32 %v1274, 0.4994258
      %v1276 = vmul.f32 %v1256, %v1275
      %v1277 = vadd.f32 %v1276, 1.0
      %v1278 = vrcp.pop %v1277
      %v1279 = vmul.f32 %v1277, %v1278
      %v1280 = vsub.f32 1.0, %v1279
      %v1281 = vmul.f32 %v1278, %v1280
      %v1282 = vadd.f32 %v1278, %v1281
      %vm1283 = vweird.f32 %v1277
      %vm1284 = vweird.f32 %v1278
      %vm1285 = vmor %vm1283, %vm1284
      %v1286 = vsel %vm1285, %v1278, %v1282
      %v1287 = vand.u32 2147483647, %v1277
      %vm1288 = vcmp.eq.f32.partialorder %v1287, 8.507059e+37
      %v1289 = vand.u32 %v1277, 2147483648
      %v1290 = vor.u32 1.1754944e-38, %v1289
      %v1291 = vsel %vm1288, %v1290, %v1286
      %v1292 = vmul.f32 %v1267, %v1291
      %v1293 = vmin.f32 %v1292, 1.0
      %v1294 = vmax.f32 %v1293, -1.0
      %v1295 = vadd.f32 %v1294, 1.0
      %v1296 = vmul.f32 %v1253, %v1295
      %s1297 = scalar_lea.vmem %s335, 8
      %1298 = vst [vmem:[%s1297] sm:$0xff] %v1296
      %v1299 = vmul.f32 %v1222, %v1249
      %v1300 = vmul.f32 %v1299, %v767
      %v1301 = vadd.f32 %v1300, %v772
      %v1302 = vmul.f32 %v1301, 0.5
      %v1303 = vmul.f32 %v1301, 0.70710677
      %v1304 = vmul.f32 %v1303, %v1303
      %v1305 = vmin.f32 16.0, %v1304
      %v1306 = vmul.f32 %v1305, 2.1237322e-06
      %v1307 = vadd.f32 %v1306, 0.00028619796
      %v1308 = vmul.f32 %v1305, %v1307
      %v1309 = vadd.f32 %v1308, 0.0036580483
      %v1310 = vmul.f32 %v1305, %v1309
      %v1311 = vadd.f32 %v1310, 0.05243302
      %v1312 = vmul.f32 %v1305, %v1311
      %v1313 = vadd.f32 %v1312, 0.18741608
      %v1314 = vmul.f32 %v1305, %v1313
      %v1315 = vadd.f32 %v1314, 1.1283791
      %v1316 = vmul.f32 %v1303, %v1315
      %v1317 = vmul.f32 %v1305, 3.8918573e-05
      %v1318 = vadd.f32 %v1317, 0.001143296
      %v1319 = vmul.f32 %v1305, %v1318
      %v1320 = vadd.f32 %v1319, 0.014752088
      %v1321 = vmul.f32 %v1305, %v1320
      %v1322 = vadd.f32 %v1321, 0.112945676
      %v1323 = vmul.f32 %v1305, %v1322
      %v1324 = vadd.f32 %v1323, 0.4994258
      %v1325 = vmul.f32 %v1305, %v1324
      %v1326 = vadd.f32 %v1325, 1.0
      %v1327 = vrcp.pop %v1326
      %v1328 = vmul.f32 %v1326, %v1327
      %v1329 = vsub.f32 1.0, %v1328
      %v1330 = vmul.f32 %v1327, %v1329
      %v1331 = vadd.f32 %v1327, %v1330
      %vm1332 = vweird.f32 %v1326
      %vm1333 = vweird.f32 %v1327
      %vm1334 = vmor %vm1332, %vm1333
      %v1335 = vsel %vm1334, %v1327, %v1331
      %v1336 = vand.u32 2147483647, %v1326
      %vm1337 = vcmp.eq.f32.partialorder %v1336, 8.507059e+37
      %v1338 = vand.u32 %v1326, 2147483648
      %v1339 = vor.u32 1.1754944e-38, %v1338
      %v1340 = vsel %vm1337, %v1339, %v1335
      %v1341 = vmul.f32 %v1316, %v1340
      %v1342 = vmin.f32 %v1341, 1.0
      %v1343 = vmax.f32 %v1342, -1.0
      %v1344 = vadd.f32 %v1343, 1.0
      %v1345 = vmul.f32 %v1302, %v1344
      %s1346 = scalar_lea.vmem %s341, 8
      %1347 = vst [vmem:[%s1346] sm:$0xff] %v1345
      %s1348 = smul.u32 2, %s19
      %p1349 = scmp.lt.s32.totalorder %s1348, 3
      %s1350 = scalar_select %p1349, %s1348, 3
      %s1351 = smul.addr %s1350, 8
      %s1352 = scalar_lea.vmem %s6, %s1351
      %s1353 = smul.u32 2, %s19
      %p1354 = scmp.lt.s32.totalorder %s1353, 3
      %s1355 = scalar_select %p1354, %s1353, 3
      %s1356 = smul.addr %s1355, 8
      %s1357 = scalar_lea.vmem %s7, %s1356
      // Predicated region
      $region45: #{_lambda_.1} parent=43 // pred_check
        %p1358 = pneg %p178
      $region46: #{_lambda_.1} parent=43 // pred_check_branch
        %1360 = sbr.rel (%p1358) target = $region48
      $region47: #{_lambda_.1} parent=43 // pred_region
        %s1361 = smul.u32 2, %s19
      $region48: #{_lambda_.1} parent=43 // pred_fallthru
        _
      // Predicated region
      $region49: #{_lambda_.1} parent=43 // pred_check
        %p1362 = pneg %p204
      $region50: #{_lambda_.1} parent=43 // pred_check_branch
        %1364 = sbr.rel (%p1362) target = $region52
      $region51: #{_lambda_.1} parent=43 // pred_region
        %s1365 = smul.u32 2, %s19
      $region52: #{_lambda_.1} parent=43 // pred_fallthru
        _
    $region44: #{_lambda_.1} parent=5 // pred_fallthru
      _
    %p1366 = scmp.le.s32.totalorder 2, %s14
    // Predicated region
    $region53: #{_lambda_.1} parent=5 // pred_check
      %p1367 = pneg %p1366
    $region54: #{_lambda_.1} parent=5 // pred_check_branch
      %1369 = sbr.rel (%p1367) target = $region56
    $region55: #{_lambda_.1} parent=5 // pred_region
      %s1370 = ssub.s32 %s14, 2
      // Predicated region
      $region57: #{_lambda_.1} parent=55 // pred_check
        %p1371 = pneg %p184
      $region58: #{_lambda_.1} parent=55 // pred_check_branch
        %1373 = sbr.rel (%p1371) target = $region60
      $region59: #{_lambda_.1} parent=55 // pred_region
        %s1374 = smul.u32 2, %s20
        %p1375 = scmp.lt.s32.totalorder %s1374, 3
        %s1376 = scalar_select %p1375, %s1374, 3
        %s1377 = smul.addr %s1376, 8
        %s1378 = scalar_lea.vmem %s6, %s1377
      $region60: #{_lambda_.1} parent=55 // pred_fallthru
        _
      // Predicated region
      $region61: #{_lambda_.1} parent=55 // pred_check
        %p1379 = pneg %p210
      $region62: #{_lambda_.1} parent=55 // pred_check_branch
        %1381 = sbr.rel (%p1379) target = $region64
      $region63: #{_lambda_.1} parent=55 // pred_region
        %s1382 = smul.u32 2, %s20
        %p1383 = scmp.lt.s32.totalorder %s1382, 3
        %s1384 = scalar_select %p1383, %s1382, 3
        %s1385 = smul.addr %s1384, 8
        %s1386 = scalar_lea.vmem %s7, %s1385
      $region64: #{_lambda_.1} parent=55 // pred_fallthru
        _
    $region56: #{_lambda_.1} parent=5 // pred_fallthru
      _
  $region6: #{_lambda_.1} parent=0 // loop_footer
    %s18 = sadd.s32 1, %s14
  $region7: #{_lambda_.1} parent=0 // loop_footer_branch
    %13 = sbr.rel target = $region3
  $region8: #{_lambda_.1} parent=0 // loop_exit
    _

</llo_original>
